<compile_context>
chip_gen: v7x
topology: tpu7x:2x2x1
jax: 0.10.0
libtpu: 0.0.40
codegen_flags: <defaults>
</compile_context>

<pallas_src>
import functools
import math

import jax
import jax.numpy as jnp
from jax import lax
from jax.experimental import pallas as pl
from jax.experimental.pallas import tpu as pltpu


# dot_general dimension numbers for  x @ W^T  /  K @ Q^T  (contract last axes).
_DN_LAST_LAST = (((1,), (1,)), ((), ()))

_MASK_BIAS = -1e30  # large finite negative: masked positions -> ~0 after softmax.


# ----------------------------------------------------------------------------
# Fused kernel: projections + per-head attention + head merge + composition.
# ----------------------------------------------------------------------------
def _fused_attn_kernel(k_ref, q_ref, v_ref, bias_ref,
                       wk_ref, wq_ref, wv_ref, wc_ref,
                       o_ref, q_scr, v_scr,
                       *, num_heads, head_dim, v_head_dim, scale):
    compute_dtype = k_ref.dtype

    # Q / V projections depend only on the batch index -> compute once per
    # batch (first Lk tile) and cache in VMEM scratch for the remaining tiles.
    @pl.when(pl.program_id(1) == 0)
    def _():
        q_scr[...] = lax.dot_general(
            q_ref[0], wq_ref[...], _DN_LAST_LAST,
            preferred_element_type=jnp.float32).astype(q_scr.dtype)
        v_scr[...] = lax.dot_general(
            v_ref[0], wv_ref[...], _DN_LAST_LAST,
            preferred_element_type=jnp.float32).astype(v_scr.dtype)

    # K projection for this Lk tile; fold the 1/sqrt(d) scale in here (cheaper
    # on [TLk, key_dim] than on the [TLk, Lq] score matrix).
    k_proj = (lax.dot_general(
        k_ref[0], wk_ref[...], _DN_LAST_LAST,
        preferred_element_type=jnp.float32) * scale).astype(compute_dtype)

    q_all = q_scr[...]                        # [Lq, key_dim]
    v_all = v_scr[...]                        # [Lq, value_dim]
    bias = bias_ref[0].astype(jnp.float32)    # [TLk, Lq] additive mask bias

    head_outs = []
    for h in range(num_heads):
        k_h = k_proj[:, h * head_dim:(h + 1) * head_dim]      # [TLk, d]
        q_h = q_all[:, h * head_dim:(h + 1) * head_dim]       # [Lq,  d]
        v_h = v_all[:, h * v_head_dim:(h + 1) * v_head_dim]   # [Lq,  dv]

        # scores = (K / sqrt(d)) @ Q^T  — contract the shared head_dim axes,
        # no in-kernel transpose.
        s = lax.dot_general(k_h, q_h, _DN_LAST_LAST,
                            preferred_element_type=jnp.float32)
        s = s + bias

        # Softmax over the query axis (matches the PyTorch module's dim=-1).
        m = jnp.max(s, axis=-1, keepdims=True)
        e = jnp.exp(s - m)
        denom = jnp.sum(e, axis=-1, keepdims=True)
        p = e * pl.reciprocal(denom, approx=True)

        head_outs.append(
            jnp.dot(p.astype(compute_dtype), v_h,
                    preferred_element_type=jnp.float32))

    # Merge heads in-kernel -> lane-dense [TLk, value_dim] slab; no JAX-side
    # transpose / relayout after the kernel.
    merged = jnp.concatenate(head_outs, axis=-1).astype(compute_dtype)

    # Composition linear fused into the same kernel.
    out = lax.dot_general(merged, wc_ref[...], _DN_LAST_LAST,
                          preferred_element_type=jnp.float32)
    o_ref[0] = out.astype(o_ref.dtype)


def _pick_row_tile(L):
    for t in (512, 256, 128):
        if L % t == 0:
            return t
    return L  # small / irregular sequence: one full-L tile per batch


# ----------------------------------------------------------------------------
# Forward wrapper: single fused pallas_call.
# ----------------------------------------------------------------------------
def distributed_dot_product_attn(keys, queries, values, attn_mask, params,
                                 num_heads):
    Wk, Wq, Wv, Wc = params["Wk"], params["Wq"], params["Wv"], params["Wc"]
    key_dim = Wk.shape[0]
    query_dim = Wq.shape[1]
    value_dim = Wv.shape[0]
    head_dim = key_dim // num_heads
    v_head_dim = value_dim // num_heads

    B, Lk, _ = keys.shape
    Lq = queries.shape[1]
    # attn [Lk, Lq] contracts against V's sequence axis -> must match Lq.
    assert values.shape[1] == Lq

    # Additive mask bias (0 / -1e30); bf16 halves mask HBM traffic and the
    # in-kernel apply is a single add (no compare+select, no -inf NaN risk).
    bias = jnp.where(attn_mask, jnp.float32(_MASK_BIAS),
                     jnp.float32(0.0)).astype(jnp.bfloat16)

    tile_lk = _pick_row_tile(Lk)
    grid = (B, Lk // tile_lk)
    scale = 1.0 / math.sqrt(head_dim)

    # TODO(synk): the PyTorch "distributed" RightTransposeMultiplication /
    # FullMultiplication chunked autograd ops are forward-equivalent to plain
    # matmuls; only that forward math is implemented here.
    kernel = functools.partial(
        _fused_attn_kernel, num_heads=num_heads, head_dim=head_dim,
        v_head_dim=v_head_dim, scale=scale)

    return pl.pallas_call(
        kernel,
        out_shape=jax.ShapeDtypeStruct((B, Lk, value_dim), keys.dtype),
        grid=grid,
        in_specs=[
            pl.BlockSpec((1, tile_lk, key_dim), lambda b, t: (b, t, 0)),
            pl.BlockSpec((1, Lq, query_dim), lambda b, t: (b, 0, 0)),
            pl.BlockSpec((1, Lq, value_dim), lambda b, t: (b, 0, 0)),
            pl.BlockSpec((1, tile_lk, Lq), lambda b, t: (b, t, 0)),
            pl.BlockSpec((key_dim, key_dim), lambda b, t: (0, 0)),
            pl.BlockSpec((key_dim, query_dim), lambda b, t: (0, 0)),
            pl.BlockSpec((value_dim, value_dim), lambda b, t: (0, 0)),
            pl.BlockSpec((value_dim, value_dim), lambda b, t: (0, 0)),
        ],
        out_specs=pl.BlockSpec((1, tile_lk, value_dim), lambda b, t: (b, t, 0)),
        scratch_shapes=[
            pltpu.VMEM((Lq, key_dim), keys.dtype),    # cached Q projection
            pltpu.VMEM((Lq, value_dim), keys.dtype),  # cached V projection
        ],
        compiler_params=pltpu.CompilerParams(
            dimension_semantics=("parallel", "arbitrary"),
            vmem_limit_bytes=48 * 1024 * 1024),
    )(keys, queries, values, bias, Wk, Wq, Wv, Wc)


# ----------------------------------------------------------------------------
# Pure-JAX reference (mirrors the PyTorch module, -inf masking).
# ----------------------------------------------------------------------------
def reference(keys, queries, values, attn_mask, params, num_heads):
    Wk, Wq, Wv, Wc = params["Wk"], params["Wq"], params["Wv"], params["Wc"]
    key_dim = Wk.shape[0]
    value_dim = Wv.shape[0]
    head_dim = key_dim // num_heads

    k = keys @ Wk.T
    q = queries @ Wq.T
    v = values @ Wv.T
    B, Lk, _ = k.shape
    Lq = q.shape[1]
    k = k.reshape(B, Lk, num_heads, head_dim).transpose(0, 2, 1, 3)
    q = q.reshape(B, Lq, num_heads, head_dim).transpose(0, 2, 1, 3)
    v = v.reshape(B, Lq, num_heads, value_dim // num_heads).transpose(0, 2, 1, 3)

    s = jnp.einsum("bhkd,bhqd->bhkq", k, q) / math.sqrt(head_dim)
    s = jnp.where(attn_mask[:, None, :, :], -jnp.inf, s)
    p = jax.nn.softmax(s, axis=-1)
    out = jnp.einsum("bhkq,bhqd->bhkd", p, v)
    out = out.transpose(0, 2, 1, 3).reshape(B, Lk, value_dim)
    return out @ Wc.T


if __name__ == "__main__":
    # Small shapes consistent with the module.
    B = 2
    Lk = Lq = 8
    key_dim = 32
    value_dim = 32
    query_dim = 32
    num_heads = 2

    root = jax.random.PRNGKey(0)
    ks = jax.random.split(root, 8)

    def linear_init(k, dout, din):
        bound = 1.0 / math.sqrt(din)
        return jax.random.uniform(k, (dout, din), jnp.float32, -bound, bound)

    params = {
        "Wk": linear_init(ks[0], key_dim, key_dim),
        "Wq": linear_init(ks[1], key_dim, query_dim),
        "Wv": linear_init(ks[2], value_dim, value_dim),
        "Wc": linear_init(ks[3], value_dim, value_dim),
    }

    keys_in = jax.random.normal(ks[4], (B, Lk, key_dim), jnp.float32)
    queries_in = jax.random.normal(ks[5], (B, Lq, query_dim), jnp.float32)
    values_in = jax.random.normal(ks[6], (B, Lq, value_dim), jnp.float32)

    # Boolean mask [B, Lk, Lq]; keep at least one unmasked column per row so
    # the -inf reference stays finite (kernel itself is NaN-safe via -1e30).
    attn_mask = jax.random.bernoulli(ks[7], 0.3, (B, Lk, Lq))
    attn_mask = attn_mask.at[:, :, 0].set(False)

    out = distributed_dot_product_attn(
        keys_in, queries_in, values_in, attn_mask, params, num_heads)
    out = jax.block_until_ready(out)

    ref = reference(keys_in, queries_in, values_in, attn_mask, params,
                    num_heads)
    assert out.shape == (B, Lk, value_dim)
    assert jnp.allclose(out, ref, atol=2e-3, rtol=2e-3), "mismatch vs reference"

    print("KERNEL_OK")
</pallas_src>

<mosaic_0001>
module attributes {stable_mosaic.version = 11 : i64} {
  func.func @_fused_attn_kernel(%arg0: i32, %arg1: i32, %arg2: memref<1x8x32xf32, #tpu.memory_space<vmem>>, %arg3: memref<1x8x32xf32, #tpu.memory_space<vmem>>, %arg4: memref<1x8x32xf32, #tpu.memory_space<vmem>>, %arg5: memref<1x8x8xbf16, #tpu.memory_space<vmem>>, %arg6: memref<32x32xf32, #tpu.memory_space<vmem>>, %arg7: memref<32x32xf32, #tpu.memory_space<vmem>>, %arg8: memref<32x32xf32, #tpu.memory_space<vmem>>, %arg9: memref<32x32xf32, #tpu.memory_space<vmem>>, %arg10: memref<1x8x32xf32, #tpu.memory_space<vmem>>, %arg11: memref<8x32xf32, #tpu.memory_space<vmem>>, %arg12: memref<8x32xf32, #tpu.memory_space<vmem>>) attributes {dimension_semantics = [#tpu.dimension_semantics<parallel>, #tpu.dimension_semantics<arbitrary>], iteration_bounds = array<i64: 2, 1>, scalar_prefetch = 0 : i64, scratch_operands = 2 : i64, tpu.core_type = #tpu.core_type<tc>, window_params = [{transform_indices = @transform_0, window_bounds = array<i64: 1, 8, 32>}, {transform_indices = @transform_1, window_bounds = array<i64: 1, 8, 32>}, {transform_indices = @transform_2, window_bounds = array<i64: 1, 8, 32>}, {transform_indices = @transform_3, window_bounds = array<i64: 1, 8, 8>}, {pipeline_mode = #tpu.pipeline_mode<synchronous>, transform_indices = @transform_4, window_bounds = array<i64: 32, 32>}, {pipeline_mode = #tpu.pipeline_mode<synchronous>, transform_indices = @transform_5, window_bounds = array<i64: 32, 32>}, {pipeline_mode = #tpu.pipeline_mode<synchronous>, transform_indices = @transform_6, window_bounds = array<i64: 32, 32>}, {pipeline_mode = #tpu.pipeline_mode<synchronous>, transform_indices = @transform_7, window_bounds = array<i64: 32, 32>}, {transform_indices = @transform_8, window_bounds = array<i64: 1, 8, 32>}]} {
    %c0_i32 = arith.constant 0 : i32
    %0 = arith.cmpi eq, %arg1, %c0_i32 : i32
    %1 = arith.extui %0 : i1 to i32
    %c0_i32_0 = arith.constant 0 : i32
    %2 = arith.cmpi ne, %1, %c0_i32_0 : i32
    scf.if %2 {
      %c0_27 = arith.constant 0 : index
      %c0_28 = arith.constant 0 : index
      %c0_29 = arith.constant 0 : index
      %52 = vector.load %arg3[%c0_27, %c0_28, %c0_29] : memref<1x8x32xf32, #tpu.memory_space<vmem>>, vector<1x8x32xf32>
      %53 = vector.shape_cast %52 : vector<1x8x32xf32> to vector<8x32xf32>
      %c0_30 = arith.constant 0 : index
      %c0_31 = arith.constant 0 : index
      %54 = vector.load %arg7[%c0_30, %c0_31] : memref<32x32xf32, #tpu.memory_space<vmem>>, vector<32x32xf32>
      %cst_32 = arith.constant dense<0.000000e+00> : vector<8x32xf32>
      %55 = tpu.matmul %53, %54, %cst_32 {dimension_numbers = #tpu.dot_dimension_numbers<[1], [1], [0], [0], [0, 0, 1, 0], [], []>} : vector<8x32xf32>, vector<32x32xf32>, vector<8x32xf32> -> vector<8x32xf32>
      %c0_33 = arith.constant 0 : index
      %c0_34 = arith.constant 0 : index
      %56 = vector.load %arg11[%c0_33, %c0_34] : memref<8x32xf32, #tpu.memory_space<vmem>>, vector<8x32xf32>
      tpu.vector_store %arg11[%c0_33, %c0_34], %55 {strides = array<i32>} : memref<8x32xf32, #tpu.memory_space<vmem>>, vector<8x32xf32>,
      %c0_35 = arith.constant 0 : index
      %c0_36 = arith.constant 0 : index
      %c0_37 = arith.constant 0 : index
      %57 = vector.load %arg4[%c0_35, %c0_36, %c0_37] : memref<1x8x32xf32, #tpu.memory_space<vmem>>, vector<1x8x32xf32>
      %58 = vector.shape_cast %57 : vector<1x8x32xf32> to vector<8x32xf32>
      %c0_38 = arith.constant 0 : index
      %c0_39 = arith.constant 0 : index
      %59 = vector.load %arg8[%c0_38, %c0_39] : memref<32x32xf32, #tpu.memory_space<vmem>>, vector<32x32xf32>
      %cst_40 = arith.constant dense<0.000000e+00> : vector<8x32xf32>
      %60 = tpu.matmul %58, %59, %cst_40 {dimension_numbers = #tpu.dot_dimension_numbers<[1], [1], [0], [0], [0, 0, 1, 0], [], []>} : vector<8x32xf32>, vector<32x32xf32>, vector<8x32xf32> -> vector<8x32xf32>
      %c0_41 = arith.constant 0 : index
      %c0_42 = arith.constant 0 : index
      %61 = vector.load %arg12[%c0_41, %c0_42] : memref<8x32xf32, #tpu.memory_space<vmem>>, vector<8x32xf32>
      tpu.vector_store %arg12[%c0_41, %c0_42], %60 {strides = array<i32>} : memref<8x32xf32, #tpu.memory_space<vmem>>, vector<8x32xf32>,
    } else {
    }
    %c0 = arith.constant 0 : index
    %c0_1 = arith.constant 0 : index
    %c0_2 = arith.constant 0 : index
    %3 = vector.load %arg2[%c0, %c0_1, %c0_2] : memref<1x8x32xf32, #tpu.memory_space<vmem>>, vector<1x8x32xf32>
    %4 = vector.shape_cast %3 : vector<1x8x32xf32> to vector<8x32xf32>
    %c0_3 = arith.constant 0 : index
    %c0_4 = arith.constant 0 : index
    %5 = vector.load %arg6[%c0_3, %c0_4] : memref<32x32xf32, #tpu.memory_space<vmem>>, vector<32x32xf32>
    %cst = arith.constant dense<0.000000e+00> : vector<8x32xf32>
    %6 = tpu.matmul %4, %5, %cst {dimension_numbers = #tpu.dot_dimension_numbers<[1], [1], [0], [0], [0, 0, 1, 0], [], []>} : vector<8x32xf32>, vector<32x32xf32>, vector<8x32xf32> -> vector<8x32xf32>
    %cst_5 = arith.constant 2.500000e-01 : f32
    %7 = vector.broadcast %cst_5 : f32 to vector<8x32xf32>
    %8 = arith.mulf %6, %7 : vector<8x32xf32>
    %c0_6 = arith.constant 0 : index
    %c0_7 = arith.constant 0 : index
    %9 = vector.load %arg11[%c0_6, %c0_7] : memref<8x32xf32, #tpu.memory_space<vmem>>, vector<8x32xf32>
    %c0_8 = arith.constant 0 : index
    %c0_9 = arith.constant 0 : index
    %10 = vector.load %arg12[%c0_8, %c0_9] : memref<8x32xf32, #tpu.memory_space<vmem>>, vector<8x32xf32>
    %c0_10 = arith.constant 0 : index
    %c0_11 = arith.constant 0 : index
    %c0_12 = arith.constant 0 : index
    %11 = vector.load %arg5[%c0_10, %c0_11, %c0_12] : memref<1x8x8xbf16, #tpu.memory_space<vmem>>, vector<1x8x8xbf16>
    %12 = vector.shape_cast %11 : vector<1x8x8xbf16> to vector<8x8xbf16>
    %13 = arith.extf %12 : vector<8x8xbf16> to vector<8x8xf32>
    %14 = vector.extract_strided_slice %8 {offsets = [0, 0], sizes = [8, 16], strides = [1, 1]} : vector<8x32xf32> to vector<8x16xf32>
    %15 = vector.extract_strided_slice %9 {offsets = [0, 0], sizes = [8, 16], strides = [1, 1]} : vector<8x32xf32> to vector<8x16xf32>
    %16 = vector.extract_strided_slice %10 {offsets = [0, 0], sizes = [8, 16], strides = [1, 1]} : vector<8x32xf32> to vector<8x16xf32>
    %cst_13 = arith.constant dense<0.000000e+00> : vector<8x8xf32>
    %17 = tpu.matmul %14, %15, %cst_13 {dimension_numbers = #tpu.dot_dimension_numbers<[1], [1], [0], [0], [0, 0, 1, 0], [], []>} : vector<8x16xf32>, vector<8x16xf32>, vector<8x8xf32> -> vector<8x8xf32>
    %18 = arith.addf %17, %13 : vector<8x8xf32>
    %cst_14 = arith.constant dense<0xFF800000> : vector<8xf32>
    %19 = vector.multi_reduction <maximumf>, %18, %cst_14 [1] : vector<8x8xf32> to vector<8xf32>
    %20 = vector.shape_cast %19 : vector<8xf32> to vector<8x1xf32>
    %21 = vector.broadcast %20 : vector<8x1xf32> to vector<8x8xf32>
    %22 = arith.subf %18, %21 : vector<8x8xf32>
    %23 = math.exp %22 : vector<8x8xf32>
    %cst_15 = arith.constant dense<0.000000e+00> : vector<8xf32>
    %24 = vector.multi_reduction <add>, %23, %cst_15 [1] : vector<8x8xf32> to vector<8xf32>
    %25 = vector.shape_cast %24 : vector<8xf32> to vector<8x1xf32>
    %26 = tpu.reciprocal %25 {approx = true} : vector<8x1xf32> -> vector<8x1xf32>
    %27 = vector.broadcast %26 : vector<8x1xf32> to vector<8x8xf32>
    %28 = arith.mulf %23, %27 : vector<8x8xf32>
    %cst_16 = arith.constant dense<0.000000e+00> : vector<8x16xf32>
    %29 = tpu.matmul %28, %16, %cst_16 {dimension_numbers = #tpu.dot_dimension_numbers<[1], [0], [0], [1], [0, 0, 1, 1], [], []>} : vector<8x8xf32>, vector<8x16xf32>, vector<8x16xf32> -> vector<8x16xf32>
    %30 = vector.extract_strided_slice %8 {offsets = [0, 16], sizes = [8, 16], strides = [1, 1]} : vector<8x32xf32> to vector<8x16xf32>
    %31 = vector.extract_strided_slice %9 {offsets = [0, 16], sizes = [8, 16], strides = [1, 1]} : vector<8x32xf32> to vector<8x16xf32>
    %32 = vector.extract_strided_slice %10 {offsets = [0, 16], sizes = [8, 16], strides = [1, 1]} : vector<8x32xf32> to vector<8x16xf32>
    %cst_17 = arith.constant dense<0.000000e+00> : vector<8x8xf32>
    %33 = tpu.matmul %30, %31, %cst_17 {dimension_numbers = #tpu.dot_dimension_numbers<[1], [1], [0], [0], [0, 0, 1, 0], [], []>} : vector<8x16xf32>, vector<8x16xf32>, vector<8x8xf32> -> vector<8x8xf32>
    %34 = arith.addf %33, %13 : vector<8x8xf32>
    %cst_18 = arith.constant dense<0xFF800000> : vector<8xf32>
    %35 = vector.multi_reduction <maximumf>, %34, %cst_18 [1] : vector<8x8xf32> to vector<8xf32>
    %36 = vector.shape_cast %35 : vector<8xf32> to vector<8x1xf32>
    %37 = vector.broadcast %36 : vector<8x1xf32> to vector<8x8xf32>
    %38 = arith.subf %34, %37 : vector<8x8xf32>
    %39 = math.exp %38 : vector<8x8xf32>
    %cst_19 = arith.constant dense<0.000000e+00> : vector<8xf32>
    %40 = vector.multi_reduction <add>, %39, %cst_19 [1] : vector<8x8xf32> to vector<8xf32>
    %41 = vector.shape_cast %40 : vector<8xf32> to vector<8x1xf32>
    %42 = tpu.reciprocal %41 {approx = true} : vector<8x1xf32> -> vector<8x1xf32>
    %43 = vector.broadcast %42 : vector<8x1xf32> to vector<8x8xf32>
    %44 = arith.mulf %39, %43 : vector<8x8xf32>
    %cst_20 = arith.constant dense<0.000000e+00> : vector<8x16xf32>
    %45 = tpu.matmul %44, %32, %cst_20 {dimension_numbers = #tpu.dot_dimension_numbers<[1], [0], [0], [1], [0, 0, 1, 1], [], []>} : vector<8x8xf32>, vector<8x16xf32>, vector<8x16xf32> -> vector<8x16xf32>
    %46 = tpu.concatenate %29, %45 in 1 : vector<8x16xf32>, vector<8x16xf32> -> vector<8x32xf32>
    %c0_21 = arith.constant 0 : index
    %c0_22 = arith.constant 0 : index
    %47 = vector.load %arg9[%c0_21, %c0_22] : memref<32x32xf32, #tpu.memory_space<vmem>>, vector<32x32xf32>
    %cst_23 = arith.constant dense<0.000000e+00> : vector<8x32xf32>
    %48 = tpu.matmul %46, %47, %cst_23 {dimension_numbers = #tpu.dot_dimension_numbers<[1], [1], [0], [0], [0, 0, 1, 0], [], []>} : vector<8x32xf32>, vector<32x32xf32>, vector<8x32xf32> -> vector<8x32xf32>
    %c0_24 = arith.constant 0 : index
    %c0_25 = arith.constant 0 : index
    %c0_26 = arith.constant 0 : index
    %49 = vector.load %arg10[%c0_24, %c0_25, %c0_26] : memref<1x8x32xf32, #tpu.memory_space<vmem>>, vector<1x8x32xf32>
    %50 = vector.shape_cast %49 : vector<1x8x32xf32> to vector<8x32xf32>
    %51 = vector.shape_cast %48 : vector<8x32xf32> to vector<1x8x32xf32>
    tpu.vector_store %arg10[%c0_24, %c0_25, %c0_26], %51 {strides = array<i32>} : memref<1x8x32xf32, #tpu.memory_space<vmem>>, vector<1x8x32xf32>,
    return
  }
  func.func @transform_0(%arg0: i32, %arg1: i32) -> (i32, i32, i32) {
    %c0_i32 = arith.constant 0 : i32
    %c0_i32_0 = arith.constant 0 : i32
    return %arg0, %arg1, %c0_i32 : i32, i32, i32
  }
  func.func @transform_1(%arg0: i32, %arg1: i32) -> (i32, i32, i32) {
    %c0_i32 = arith.constant 0 : i32
    %c0_i32_0 = arith.constant 0 : i32
    %c0_i32_1 = arith.constant 0 : i32
    return %arg0, %c0_i32, %c0_i32_0 : i32, i32, i32
  }
  func.func @transform_2(%arg0: i32, %arg1: i32) -> (i32, i32, i32) {
    %c0_i32 = arith.constant 0 : i32
    %c0_i32_0 = arith.constant 0 : i32
    %c0_i32_1 = arith.constant 0 : i32
    return %arg0, %c0_i32, %c0_i32_0 : i32, i32, i32
  }
  func.func @transform_3(%arg0: i32, %arg1: i32) -> (i32, i32, i32) {
    %c0_i32 = arith.constant 0 : i32
    %c0_i32_0 = arith.constant 0 : i32
    return %arg0, %arg1, %c0_i32 : i32, i32, i32
  }
  func.func @transform_4(%arg0: i32, %arg1: i32) -> (i32, i32) {
    %c0_i32 = arith.constant 0 : i32
    %c0_i32_0 = arith.constant 0 : i32
    %c0_i32_1 = arith.constant 0 : i32
    return %c0_i32, %c0_i32_0 : i32, i32
  }
  func.func @transform_5(%arg0: i32, %arg1: i32) -> (i32, i32) {
    %c0_i32 = arith.constant 0 : i32
    %c0_i32_0 = arith.constant 0 : i32
    %c0_i32_1 = arith.constant 0 : i32
    return %c0_i32, %c0_i32_0 : i32, i32
  }
  func.func @transform_6(%arg0: i32, %arg1: i32) -> (i32, i32) {
    %c0_i32 = arith.constant 0 : i32
    %c0_i32_0 = arith.constant 0 : i32
    %c0_i32_1 = arith.constant 0 : i32
    return %c0_i32, %c0_i32_0 : i32, i32
  }
  func.func @transform_7(%arg0: i32, %arg1: i32) -> (i32, i32) {
    %c0_i32 = arith.constant 0 : i32
    %c0_i32_0 = arith.constant 0 : i32
    %c0_i32_1 = arith.constant 0 : i32
    return %c0_i32, %c0_i32_0 : i32, i32
  }
  func.func @transform_8(%arg0: i32, %arg1: i32) -> (i32, i32, i32) {
    %c0_i32 = arith.constant 0 : i32
    %c0_i32_0 = arith.constant 0 : i32
    return %arg0, %arg1, %c0_i32 : i32, i32, i32
  }
}

</mosaic_0001>

<llo_original>
// kernel: tpu_custom_call.1
$region0: #{tpu_custom_call.1}
  #allocation0 [shape = 'u32[]', space=smem, size = 0x4, offset = 0x4, fixed_abs, tag = 'smem constant byte address 0x4 - core index']
  #allocation1 [shape = 'u32[144,128]{1,0:T(1,128)}', space=vmem, size = 0x12000, scoped, tag = 'internal scratch']
  #allocation2 [shape = 'f32[8,32]{1,0:T(8,128)}', space=vmem, size = 0x1000, scoped, tag = 'scratch operand']
  #allocation3 [shape = 'f32[8,32]{1,0:T(8,128)}', space=vmem, size = 0x1000, scoped, tag = 'scratch operand']
  %s0 = inlined_call_operand.hbm [shape: f32[2,8,32], index: 0, kind: input, shape index: {}]
  %s1 = inlined_call_operand.hbm [shape: f32[2,8,32], index: 1, kind: input, shape index: {}]
  %s2 = inlined_call_operand.hbm [shape: f32[2,8,32], index: 2, kind: input, shape index: {}]
  %s3 = inlined_call_operand.vmem [shape: bf16[2,8,8], index: 3, kind: input, shape index: {}]
  %s4 = inlined_call_operand.hbm [shape: f32[32,32], index: 4, kind: input, shape index: {}]
  %s5 = inlined_call_operand.hbm [shape: f32[32,32], index: 5, kind: input, shape index: {}]
  %s6 = inlined_call_operand.hbm [shape: f32[32,32], index: 6, kind: input, shape index: {}]
  %s7 = inlined_call_operand.hbm [shape: f32[32,32], index: 7, kind: input, shape index: {}]
  %s8 = inlined_call_operand.hbm [shape: f32[2,8,32], index: 8, kind: output, shape index: {}]
  %s9 = sld [smem:[#allocation0]]
  $region97: #{tpu_custom_call.1} parent=0
    _
  %s11 = ssub.s32 1, %s9
  %s12 = scalar_select 0, %s11, %s9
  $region1: #{tpu_custom_call.1} parent=0
    #allocation4 [shape = 'u8[8192]{0}', space=vmem, size = 0x2000, scoped, tag = 'input window, operand 0']
    #allocation5 [shape = 's32[2]{0}', space=sflag, size = 0x8, scoped, tag = 'scoped memory for tpu_custom_call.1']
    #allocation6 [shape = 's32[2]{0}', space=sflag, size = 0x8, scoped, tag = 'scoped memory for tpu_custom_call.1']
    #allocation7 [shape = 'u8[8192]{0}', space=vmem, size = 0x2000, scoped, tag = 'input window, operand 1']
    #allocation8 [shape = 's32[2]{0}', space=sflag, size = 0x8, scoped, tag = 'scoped memory for tpu_custom_call.1']
    #allocation9 [shape = 'u8[8192]{0}', space=vmem, size = 0x2000, scoped, tag = 'input window, operand 2']
    #allocation10 [shape = 'u8[16384]{0}', space=vmem, size = 0x4000, scoped, tag = 'input window, operand 4, single buffered']
    #allocation11 [shape = 's32[1]{0}', space=sflag, size = 0x4, scoped, tag = 'scoped memory for tpu_custom_call.1']
    #allocation12 [shape = 'u8[16384]{0}', space=vmem, size = 0x4000, scoped, tag = 'input window, operand 5, single buffered']
    #allocation13 [shape = 'u8[16384]{0}', space=vmem, size = 0x4000, scoped, tag = 'input window, operand 6, single buffered']
    #allocation14 [shape = 's32[1]{0}', space=sflag, size = 0x4, scoped, tag = 'scoped memory for tpu_custom_call.1']
    #allocation15 [shape = 'u8[16384]{0}', space=vmem, size = 0x4000, scoped, tag = 'input window, operand 7, single buffered']
    #allocation16 [shape = 'u8[8192]{0}', space=vmem, size = 0x2000, scoped, tag = 'output window, operand 0']
    %13 = vsyncpa [#allocation5], 0
    %s14 = scalar_lea.sflag [#allocation5], 1
    %15 = vsyncpa %s14, 0
    %16 = vsyncpa [#allocation8], 0
    %s17 = scalar_lea.sflag [#allocation8], 1
    %18 = vsyncpa %s17, 0
    %19 = vsyncpa [#allocation11], 0
    %20 = vsyncpa [#allocation14], 0
    %21 = vsyncpa [#allocation6], 0
    %s22 = scalar_lea.sflag [#allocation6], 1
    %23 = vsyncpa %s22, 0
    loop: start=0, step=1, limit=4
    $region2: #{tpu_custom_call.1} parent=1 // loop_pre_header
      _
    $region3: #{tpu_custom_call.1} parent=1 // loop_header
      %s25 = sphi 0, %s29
      %p26 = scmp.ge.s32.totalorder %s25, 4
      %s32 = sphi 0, %s44
      %s33 = sphi 0, %s40
      %s34 = sphi 0, %s32
      %s35 = sphi 0, %s33
      %s36 = sphi 0, %s34
      %s37 = sphi 0, %s35
      %s49 = sphi 0, %s51
      %s52 = sphi 0, %s49
      %s53 = sphi 0, %s52
      %s69 = sphi 0, %s53
      %s75 = sphi 0, %s77
      %s78 = sphi 0, %s75
      %s79 = sphi 0, %s78
      %s95 = sphi 0, %s79
      %s101 = sphi 0, %s103
      %s104 = sphi 0, %s101
      %s105 = sphi 0, %s104
      %s121 = sphi 0, %s105
      %s129 = sphi 0, %s131
      %s132 = sphi 0, %s129
      %s133 = sphi 0, %s132
      %s149 = sphi 0, %s133
      %s153 = sphi 0, %s153
      %s155 = sphi 0, %s153
      %s156 = sphi 0, %s155
      %s170 = sphi 0, %s156
      %s174 = sphi 0, %s174
      %s176 = sphi 0, %s174
      %s177 = sphi 0, %s176
      %s191 = sphi 0, %s177
      %s195 = sphi 0, %s195
      %s197 = sphi 0, %s195
      %s198 = sphi 0, %s197
      %s212 = sphi 0, %s198
      %s216 = sphi 0, %s216
      %s218 = sphi 0, %s216
      %s219 = sphi 0, %s218
      %s233 = sphi 0, %s219
      %s241 = sphi 0, %s243
      %s244 = sphi 0, %s241
      %s245 = sphi 0, %s244
      %s261 = sphi 0, %s245
    $region4: #{tpu_custom_call.1} parent=1 // loop_header_branch
      %28 = sbr.rel (%p26) target = $region8
    $region5: #{tpu_custom_call.1} parent=1 // loop_body
      %s30 = ssub.s32 %s25, 1
      %s31 = ssub.s32 %s25, 2
      %s38 = sadd.s32 1, %s33
      %p39 = scmp.ge.s32.totalorder %s38, 1
      %s40 = scalar_select %p39, 0, %s38
      %s41 = sadd.s32 1, %s32
      %s42 = scalar_select %p39, %s41, %s32
      %p43 = scmp.ge.s32.totalorder %s42, 2
      %s44 = scalar_select %p43, 0, %s42
      %s45 = ssub.s32 %s32, %s44
      %s46 = ssub.s32 %s33, %s40
      %s47 = sor.u32 %s45, %s46
      %p48 = scmp.eq.s32.totalorder %s47, 0
      %s50 = sadd.s32 %s49, 1
      %s51 = scalar_select %p48, %s49, %s50
      %p54 = pneg %p48
      %p55 = scmp.eq.s32.totalorder %s25, 1
      %p56 = por %p54, %p55
      %p57 = scmp.ne.s32.totalorder %s49, %s52
      %p58 = scmp.eq.s32.totalorder %s25, 0
      %p59 = por %p57, %p58
      %p60 = scmp.ne.s32.totalorder %s49, %s52
      %p61 = scmp.eq.s32.totalorder %s30, 1
      %p62 = por %p60, %p61
      %p63 = scmp.ne.s32.totalorder %s52, %s53
      %p64 = scmp.eq.s32.totalorder %s30, 0
      %p65 = por %p63, %p64
      %p66 = scmp.ne.s32.totalorder %s52, %s53
      %p67 = scmp.eq.s32.totalorder %s31, 1
      %p68 = por %p66, %p67
      %p70 = scmp.ne.s32.totalorder %s53, %s69
      %p71 = scmp.eq.s32.totalorder %s31, 0
      %p72 = por %p70, %p71
      %s73 = ssub.s32 %s32, %s44
      %p74 = scmp.eq.s32.totalorder %s73, 0
      %s76 = sadd.s32 %s75, 1
      %s77 = scalar_select %p74, %s75, %s76
      %p80 = pneg %p74
      %p81 = scmp.eq.s32.totalorder %s25, 1
      %p82 = por %p80, %p81
      %p83 = scmp.ne.s32.totalorder %s75, %s78
      %p84 = scmp.eq.s32.totalorder %s25, 0
      %p85 = por %p83, %p84
      %p86 = scmp.ne.s32.totalorder %s75, %s78
      %p87 = scmp.eq.s32.totalorder %s30, 1
      %p88 = por %p86, %p87
      %p89 = scmp.ne.s32.totalorder %s78, %s79
      %p90 = scmp.eq.s32.totalorder %s30, 0
      %p91 = por %p89, %p90
      %p92 = scmp.ne.s32.totalorder %s78, %s79
      %p93 = scmp.eq.s32.totalorder %s31, 1
      %p94 = por %p92, %p93
      %p96 = scmp.ne.s32.totalorder %s79, %s95
      %p97 = scmp.eq.s32.totalorder %s31, 0
      %p98 = por %p96, %p97
      %s99 = ssub.s32 %s32, %s44
      %p100 = scmp.eq.s32.totalorder %s99, 0
      %s102 = sadd.s32 %s101, 1
      %s103 = scalar_select %p100, %s101, %s102
      %p106 = pneg %p100
      %p107 = scmp.eq.s32.totalorder %s25, 1
      %p108 = por %p106, %p107
      %p109 = scmp.ne.s32.totalorder %s101, %s104
      %p110 = scmp.eq.s32.totalorder %s25, 0
      %p111 = por %p109, %p110
      %p112 = scmp.ne.s32.totalorder %s101, %s104
      %p113 = scmp.eq.s32.totalorder %s30, 1
      %p114 = por %p112, %p113
      %p115 = scmp.ne.s32.totalorder %s104, %s105
      %p116 = scmp.eq.s32.totalorder %s30, 0
      %p117 = por %p115, %p116
      %p118 = scmp.ne.s32.totalorder %s104, %s105
      %p119 = scmp.eq.s32.totalorder %s31, 1
      %p120 = por %p118, %p119
      %p122 = scmp.ne.s32.totalorder %s105, %s121
      %p123 = scmp.eq.s32.totalorder %s31, 0
      %p124 = por %p122, %p123
      %s125 = ssub.s32 %s32, %s44
      %s126 = ssub.s32 %s33, %s40
      %s127 = sor.u32 %s125, %s126
      %p128 = scmp.eq.s32.totalorder %s127, 0
      %s130 = sadd.s32 %s129, 1
      %s131 = scalar_select %p128, %s129, %s130
      %p134 = pneg %p128
      %p135 = scmp.eq.s32.totalorder %s25, 1
      %p136 = por %p134, %p135
      %p137 = scmp.ne.s32.totalorder %s129, %s132
      %p138 = scmp.eq.s32.totalorder %s25, 0
      %p139 = por %p137, %p138
      %p140 = scmp.ne.s32.totalorder %s129, %s132
      %p141 = scmp.eq.s32.totalorder %s30, 1
      %p142 = por %p140, %p141
      %p143 = scmp.ne.s32.totalorder %s132, %s133
      %p144 = scmp.eq.s32.totalorder %s30, 0
      %p145 = por %p143, %p144
      %p146 = scmp.ne.s32.totalorder %s132, %s133
      %p147 = scmp.eq.s32.totalorder %s31, 1
      %p148 = por %p146, %p147
      %p150 = scmp.ne.s32.totalorder %s133, %s149
      %p151 = scmp.eq.s32.totalorder %s31, 0
      %p152 = por %p150, %p151
      %s154 = sadd.s32 %s153, 1
      %p157 = scmp.eq.s32.totalorder %s25, 1
      %p158 = scmp.ne.s32.totalorder %s153, %s155
      %p159 = scmp.eq.s32.totalorder %s25, 0
      %p160 = por %p158, %p159
      %p161 = scmp.ne.s32.totalorder %s153, %s155
      %p162 = scmp.eq.s32.totalorder %s30, 1
      %p163 = por %p161, %p162
      %p164 = scmp.ne.s32.totalorder %s155, %s156
      %p165 = scmp.eq.s32.totalorder %s30, 0
      %p166 = por %p164, %p165
      %p167 = scmp.ne.s32.totalorder %s155, %s156
      %p168 = scmp.eq.s32.totalorder %s31, 1
      %p169 = por %p167, %p168
      %p171 = scmp.ne.s32.totalorder %s156, %s170
      %p172 = scmp.eq.s32.totalorder %s31, 0
      %p173 = por %p171, %p172
      %s175 = sadd.s32 %s174, 1
      %p178 = scmp.eq.s32.totalorder %s25, 1
      %p179 = scmp.ne.s32.totalorder %s174, %s176
      %p180 = scmp.eq.s32.totalorder %s25, 0
      %p181 = por %p179, %p180
      %p182 = scmp.ne.s32.totalorder %s174, %s176
      %p183 = scmp.eq.s32.totalorder %s30, 1
      %p184 = por %p182, %p183
      %p185 = scmp.ne.s32.totalorder %s176, %s177
      %p186 = scmp.eq.s32.totalorder %s30, 0
      %p187 = por %p185, %p186
      %p188 = scmp.ne.s32.totalorder %s176, %s177
      %p189 = scmp.eq.s32.totalorder %s31, 1
      %p190 = por %p188, %p189
      %p192 = scmp.ne.s32.totalorder %s177, %s191
      %p193 = scmp.eq.s32.totalorder %s31, 0
      %p194 = por %p192, %p193
      %s196 = sadd.s32 %s195, 1
      %p199 = scmp.eq.s32.totalorder %s25, 1
      %p200 = scmp.ne.s32.totalorder %s195, %s197
      %p201 = scmp.eq.s32.totalorder %s25, 0
      %p202 = por %p200, %p201
      %p203 = scmp.ne.s32.totalorder %s195, %s197
      %p204 = scmp.eq.s32.totalorder %s30, 1
      %p205 = por %p203, %p204
      %p206 = scmp.ne.s32.totalorder %s197, %s198
      %p207 = scmp.eq.s32.totalorder %s30, 0
      %p208 = por %p206, %p207
      %p209 = scmp.ne.s32.totalorder %s197, %s198
      %p210 = scmp.eq.s32.totalorder %s31, 1
      %p211 = por %p209, %p210
      %p213 = scmp.ne.s32.totalorder %s198, %s212
      %p214 = scmp.eq.s32.totalorder %s31, 0
      %p215 = por %p213, %p214
      %s217 = sadd.s32 %s216, 1
      %p220 = scmp.eq.s32.totalorder %s25, 1
      %p221 = scmp.ne.s32.totalorder %s216, %s218
      %p222 = scmp.eq.s32.totalorder %s25, 0
      %p223 = por %p221, %p222
      %p224 = scmp.ne.s32.totalorder %s216, %s218
      %p225 = scmp.eq.s32.totalorder %s30, 1
      %p226 = por %p224, %p225
      %p227 = scmp.ne.s32.totalorder %s218, %s219
      %p228 = scmp.eq.s32.totalorder %s30, 0
      %p229 = por %p227, %p228
      %p230 = scmp.ne.s32.totalorder %s218, %s219
      %p231 = scmp.eq.s32.totalorder %s31, 1
      %p232 = por %p230, %p231
      %p234 = scmp.ne.s32.totalorder %s219, %s233
      %p235 = scmp.eq.s32.totalorder %s31, 0
      %p236 = por %p234, %p235
      %s237 = ssub.s32 %s32, %s44
      %s238 = ssub.s32 %s33, %s40
      %s239 = sor.u32 %s237, %s238
      %p240 = scmp.eq.s32.totalorder %s239, 0
      %s242 = sadd.s32 %s241, 1
      %s243 = scalar_select %p240, %s241, %s242
      %p246 = pneg %p240
      %p247 = scmp.eq.s32.totalorder %s25, 1
      %p248 = por %p246, %p247
      %p249 = scmp.ne.s32.totalorder %s241, %s244
      %p250 = scmp.eq.s32.totalorder %s25, 0
      %p251 = por %p249, %p250
      %p252 = scmp.ne.s32.totalorder %s241, %s244
      %p253 = scmp.eq.s32.totalorder %s30, 1
      %p254 = por %p252, %p253
      %p255 = scmp.ne.s32.totalorder %s244, %s245
      %p256 = scmp.eq.s32.totalorder %s30, 0
      %p257 = por %p255, %p256
      %p258 = scmp.ne.s32.totalorder %s244, %s245
      %p259 = scmp.eq.s32.totalorder %s31, 1
      %p260 = por %p258, %p259
      %p262 = scmp.ne.s32.totalorder %s245, %s261
      %p263 = scmp.eq.s32.totalorder %s31, 0
      %p264 = por %p262, %p263
      %p265 = scmp.le.s32.totalorder 1, %s25
      %p266 = scmp.lt.s32.totalorder %s25, 3
      %p267 = pnand %p265, %p266
      %p268 = pneg %p267
      // Predicated region
      $region9: #{tpu_custom_call.1} parent=5 // pred_check
        _
      $region10: #{tpu_custom_call.1} parent=5 // pred_check_branch
        %270 = sbr.rel (%p267) target = $region12
      $region11: #{tpu_custom_call.1} parent=5 // pred_region
        %s271 = ssub.s32 %s25, 1
        // Predicated region
        $region13: #{tpu_custom_call.1} parent=11 // pred_check
          %p272 = pneg %p166
        $region14: #{tpu_custom_call.1} parent=11 // pred_check_branch
          %274 = sbr.rel (%p272) target = $region16
        $region15: #{tpu_custom_call.1} parent=11 // pred_region
          %s276 = ssub.s32 512, 512
          %277 = vsyncadd [#allocation11], %s276
          %s278 = sshll.u32 [#allocation10], 4
          %s279 = int_to_ptr.vmem [resolvable:$true] %s278
          %284 = dma.hbm_to_vmem [thread:$0]  %s4, 512, %s279, [#allocation11], 128, 128, 8
        $region16: #{tpu_custom_call.1} parent=11 // pred_fallthru
          _
        // Predicated region
        $region17: #{tpu_custom_call.1} parent=11 // pred_check
          %p285 = pneg %p187
        $region18: #{tpu_custom_call.1} parent=11 // pred_check_branch
          %287 = sbr.rel (%p285) target = $region20
        $region19: #{tpu_custom_call.1} parent=11 // pred_region
          %s289 = ssub.s32 512, 512
          %290 = vsyncadd [#allocation11], %s289
          %s291 = sshll.u32 [#allocation12], 4
          %s292 = int_to_ptr.vmem [resolvable:$true] %s291
          %297 = dma.hbm_to_vmem [thread:$0]  %s5, 512, %s292, [#allocation11], 128, 128, 8
        $region20: #{tpu_custom_call.1} parent=11 // pred_fallthru
          _
        // Predicated region
        $region21: #{tpu_custom_call.1} parent=11 // pred_check
          %p298 = pneg %p208
        $region22: #{tpu_custom_call.1} parent=11 // pred_check_branch
          %300 = sbr.rel (%p298) target = $region24
        $region23: #{tpu_custom_call.1} parent=11 // pred_region
          %s302 = ssub.s32 512, 512
          %303 = vsyncadd [#allocation14], %s302
          %s304 = sshll.u32 [#allocation13], 4
          %s305 = int_to_ptr.vmem [resolvable:$true] %s304
          %310 = dma.hbm_to_vmem [thread:$0]  %s6, 512, %s305, [#allocation14], 128, 128, 8
        $region24: #{tpu_custom_call.1} parent=11 // pred_fallthru
          _
        // Predicated region
        $region25: #{tpu_custom_call.1} parent=11 // pred_check
          %p311 = pneg %p229
        $region26: #{tpu_custom_call.1} parent=11 // pred_check_branch
          %313 = sbr.rel (%p311) target = $region28
        $region27: #{tpu_custom_call.1} parent=11 // pred_region
          %s315 = ssub.s32 512, 512
          %316 = vsyncadd [#allocation14], %s315
          %s317 = sshll.u32 [#allocation15], 4
          %s318 = int_to_ptr.vmem [resolvable:$true] %s317
          %323 = dma.hbm_to_vmem [thread:$0]  %s7, 512, %s318, [#allocation14], 128, 128, 8
        $region28: #{tpu_custom_call.1} parent=11 // pred_fallthru
          _
      $region12: #{tpu_custom_call.1} parent=5 // pred_fallthru
        _
      %p324 = scmp.lt.s32.totalorder %s25, 2
      // Predicated region
      $region29: #{tpu_custom_call.1} parent=5 // pred_check
        %p325 = pneg %p324
      $region30: #{tpu_custom_call.1} parent=5 // pred_check_branch
        %327 = sbr.rel (%p325) target = $region32
      $region31: #{tpu_custom_call.1} parent=5 // pred_region
        // Predicated region
        $region33: #{tpu_custom_call.1} parent=31 // pred_check
          %p328 = pneg %p59
        $region34: #{tpu_custom_call.1} parent=31 // pred_check_branch
          %330 = sbr.rel (%p328) target = $region36
        $region35: #{tpu_custom_call.1} parent=31 // pred_region
          %s331 = sand.u32 %s49, 1
          %s332 = scalar_lea.sflag [#allocation5], %s331
          %s333 = sand.u32 %s49, 1
          %s334 = smul.addr %s333, 8
          %s335 = scalar_lea.vmem [#allocation4], %s334
          %s337 = ssub.s32 128, 128
          %338 = vsyncadd %s332, %s337
          %s339 = sadd.s32 %s33, %s32
          %s340 = smul.addr %s339, 128
          %s341 = scalar_lea.hbm %s0, %s340
          %s343 = sshll.u32 %s335, 4
          %s344 = int_to_ptr.vmem [resolvable:$true] %s343
          %346 = dma.hbm_to_vmem [thread:$0]  %s341, 128, %s344, %s332
        $region36: #{tpu_custom_call.1} parent=31 // pred_fallthru
          _
        // Predicated region
        $region37: #{tpu_custom_call.1} parent=31 // pred_check
          %p347 = pneg %p85
        $region38: #{tpu_custom_call.1} parent=31 // pred_check_branch
          %349 = sbr.rel (%p347) target = $region40
        $region39: #{tpu_custom_call.1} parent=31 // pred_region
          %s350 = sand.u32 %s25, 1
          %s351 = scalar_lea.sflag [#allocation8], %s350
          %s352 = sand.u32 %s75, 1
          %s353 = smul.addr %s352, 8
          %s354 = scalar_lea.vmem [#allocation7], %s353
          %s356 = ssub.s32 128, 128
          %357 = vsyncadd %s351, %s356
          %s358 = smul.addr %s32, 128
          %s359 = scalar_lea.hbm %s1, %s358
          %s361 = sshll.u32 %s354, 4
          %s362 = int_to_ptr.vmem [resolvable:$true] %s361
          %364 = dma.hbm_to_vmem [thread:$0]  %s359, 128, %s362, %s351
        $region40: #{tpu_custom_call.1} parent=31 // pred_fallthru
          _
        // Predicated region
        $region41: #{tpu_custom_call.1} parent=31 // pred_check
          %p365 = pneg %p111
        $region42: #{tpu_custom_call.1} parent=31 // pred_check_branch
          %367 = sbr.rel (%p365) target = $region44
        $region43: #{tpu_custom_call.1} parent=31 // pred_region
          %s368 = sand.u32 %s25, 1
          %s369 = scalar_lea.sflag [#allocation8], %s368
          %s370 = sand.u32 %s101, 1
          %s371 = smul.addr %s370, 8
          %s372 = scalar_lea.vmem [#allocation9], %s371
          %s374 = ssub.s32 128, 128
          %375 = vsyncadd %s369, %s374
          %s376 = smul.addr %s32, 128
          %s377 = scalar_lea.hbm %s2, %s376
          %s379 = sshll.u32 %s372, 4
          %s380 = int_to_ptr.vmem [resolvable:$true] %s379
          %382 = dma.hbm_to_vmem [thread:$0]  %s377, 128, %s380, %s369
        $region44: #{tpu_custom_call.1} parent=31 // pred_fallthru
          _
        // Predicated region
        $region45: #{tpu_custom_call.1} parent=31 // pred_check
          %p383 = pneg %p139
        $region46: #{tpu_custom_call.1} parent=31 // pred_check_branch
          %385 = sbr.rel (%p383) target = $region48
        $region47: #{tpu_custom_call.1} parent=31 // pred_region
          %p386 = scmp.lt.s32.totalorder %s32, 1
          %s387 = scalar_select %p386, %s32, 1
          %p388 = scmp.lt.s32.totalorder %s33, 0
          %s389 = scalar_select %p388, %s33, 0
          %s390 = sadd.s32 %s389, %s387
          %s391 = smul.addr %s390, 4
          %s392 = scalar_lea.vmem %s3, %s391
        $region48: #{tpu_custom_call.1} parent=31 // pred_fallthru
          _
      $region32: #{tpu_custom_call.1} parent=5 // pred_fallthru
        _
      %p393 = scmp.le.s32.totalorder 1, %s25
      %p394 = scmp.lt.s32.totalorder %s25, 3
      %p395 = pnand %p393, %p394
      %p396 = pneg %p395
      // Predicated region
      $region49: #{tpu_custom_call.1} parent=5 // pred_check
        _
      $region50: #{tpu_custom_call.1} parent=5 // pred_check_branch
        %398 = sbr.rel (%p395) target = $region52
      $region51: #{tpu_custom_call.1} parent=5 // pred_region
        %s399 = ssub.s32 %s25, 1
        %s400 = sand.u32 %s52, 1
        %s401 = scalar_lea.sflag [#allocation5], %s400
        %s402 = sand.u32 %s52, 1
        %s403 = smul.addr %s402, 8
        %s404 = scalar_lea.vmem [#allocation4], %s403
        // Predicated region
        $region53: #{tpu_custom_call.1} parent=51 // pred_check
          %p405 = pneg %p65
        $region54: #{tpu_custom_call.1} parent=51 // pred_check_branch
          %407 = sbr.rel (%p405) target = $region56
        $region55: #{tpu_custom_call.1} parent=51 // pred_region
          %408 = dma.done %s401, 128
        $region56: #{tpu_custom_call.1} parent=51 // pred_fallthru
          _
        %s409 = sand.u32 %s30, 1
        %s410 = scalar_lea.sflag [#allocation8], %s409
        %s411 = sand.u32 %s78, 1
        %s412 = smul.addr %s411, 8
        %s413 = scalar_lea.vmem [#allocation7], %s412
        // Predicated region
        $region57: #{tpu_custom_call.1} parent=51 // pred_check
          %p414 = pneg %p91
        $region58: #{tpu_custom_call.1} parent=51 // pred_check_branch
          %416 = sbr.rel (%p414) target = $region60
        $region59: #{tpu_custom_call.1} parent=51 // pred_region
          %417 = dma.done %s410, 128
        $region60: #{tpu_custom_call.1} parent=51 // pred_fallthru
          _
        %s418 = sand.u32 %s30, 1
        %s419 = scalar_lea.sflag [#allocation8], %s418
        %s420 = sand.u32 %s104, 1
        %s421 = smul.addr %s420, 8
        %s422 = scalar_lea.vmem [#allocation9], %s421
        // Predicated region
        $region61: #{tpu_custom_call.1} parent=51 // pred_check
          %p423 = pneg %p117
        $region62: #{tpu_custom_call.1} parent=51 // pred_check_branch
          %425 = sbr.rel (%p423) target = $region64
        $region63: #{tpu_custom_call.1} parent=51 // pred_region
          %426 = dma.done %s419, 128
        $region64: #{tpu_custom_call.1} parent=51 // pred_fallthru
          _
        // Predicated region
        $region65: #{tpu_custom_call.1} parent=51 // pred_check
          %p427 = pneg %p166
        $region66: #{tpu_custom_call.1} parent=51 // pred_check_branch
          %429 = sbr.rel (%p427) target = $region68
        $region67: #{tpu_custom_call.1} parent=51 // pred_region
          %430 = dma.done [#allocation11], 512
        $region68: #{tpu_custom_call.1} parent=51 // pred_fallthru
          _
        // Predicated region
        $region69: #{tpu_custom_call.1} parent=51 // pred_check
          %p431 = pneg %p187
        $region70: #{tpu_custom_call.1} parent=51 // pred_check_branch
          %433 = sbr.rel (%p431) target = $region72
        $region71: #{tpu_custom_call.1} parent=51 // pred_region
          %434 = dma.done [#allocation11], 512
        $region72: #{tpu_custom_call.1} parent=51 // pred_fallthru
          _
        // Predicated region
        $region73: #{tpu_custom_call.1} parent=51 // pred_check
          %p435 = pneg %p208
        $region74: #{tpu_custom_call.1} parent=51 // pred_check_branch
          %437 = sbr.rel (%p435) target = $region76
        $region75: #{tpu_custom_call.1} parent=51 // pred_region
          %438 = dma.done [#allocation14], 512
        $region76: #{tpu_custom_call.1} parent=51 // pred_fallthru
          _
        // Predicated region
        $region77: #{tpu_custom_call.1} parent=51 // pred_check
          %p439 = pneg %p229
        $region78: #{tpu_custom_call.1} parent=51 // pred_check_branch
          %441 = sbr.rel (%p439) target = $region80
        $region79: #{tpu_custom_call.1} parent=51 // pred_region
          %442 = dma.done [#allocation14], 512
        $region80: #{tpu_custom_call.1} parent=51 // pred_fallthru
          _
        %s443 = sand.u32 %s52, 1
        %s444 = scalar_lea.sflag [#allocation5], %s443
        %s445 = sand.u32 %s52, 1
        %s446 = smul.addr %s445, 8
        %s447 = scalar_lea.vmem [#allocation4], %s446
        %p448 = pneg %p65
        %p449 = pneg %p62
        %s450 = sand.u32 %s30, 1
        %s451 = scalar_lea.sflag [#allocation8], %s450
        %s452 = sand.u32 %s78, 1
        %s453 = smul.addr %s452, 8
        %s454 = scalar_lea.vmem [#allocation7], %s453
        %p455 = pneg %p91
        %p456 = pneg %p88
        %s457 = sand.u32 %s30, 1
        %s458 = scalar_lea.sflag [#allocation8], %s457
        %s459 = sand.u32 %s104, 1
        %s460 = smul.addr %s459, 8
        %s461 = scalar_lea.vmem [#allocation9], %s460
        %p462 = pneg %p117
        %p463 = pneg %p114
        %p464 = scmp.lt.s32.totalorder %s34, 1
        %s465 = scalar_select %p464, %s34, 1
        %p466 = scmp.lt.s32.totalorder %s35, 0
        %s467 = scalar_select %p466, %s35, 0
        %s468 = sadd.s32 %s467, %s465
        %s469 = smul.addr %s468, 4
        %s470 = scalar_lea.vmem %s3, %s469
        %p471 = pneg %p145
        %p472 = pneg %p142
        %p473 = pneg %p166
        %p474 = pneg %p163
        %p475 = pneg %p187
        %p476 = pneg %p184
        %p477 = pneg %p208
        %p478 = pneg %p205
        %p479 = pneg %p229
        %p480 = pneg %p226
        %p481 = pneg %p257
        %p482 = pneg %p254
        %s483 = sand.u32 %s244, 1
        %s484 = scalar_lea.sflag [#allocation6], %s483
        %s485 = sand.u32 %s244, 1
        %s486 = smul.addr %s485, 8
        %s487 = scalar_lea.vmem [#allocation16], %s486
        %p488 = scmp.lt.s32.totalorder %s34, 1
        %s489 = scalar_select %p488, %s34, 1
        %p490 = scmp.lt.s32.totalorder %s35, 0
        %s491 = scalar_select %p490, %s35, 0
        %s492 = sadd.s32 %s491, %s489
        %s493 = smul.addr %s492, 4
        %s494 = scalar_lea.vmem %s3, %s493
        %p495 = scmp.eq.s32.totalorder %s35, 0
        // Predicated region
        $region81: #{tpu_custom_call.1} parent=51 // pred_check
          %p496 = pneg %p495
        $region82: #{tpu_custom_call.1} parent=51 // pred_check_branch
          %498 = sbr.rel (%p496) target = $region84
        $region83: #{tpu_custom_call.1} parent=51 // pred_region
          %v499 = vld [vmem:[%s413] sm:$0xff]
          %v500 = vld [vmem:[#allocation12] sm:$0xff]
          %v501 = vld [vmem:[#allocation12 + $0x8] sm:$0xff]
          %v502 = vld [vmem:[#allocation12 + $0x10] sm:$0xff]
          %v503 = vld [vmem:[#allocation12 + $0x18] sm:$0xff]
          %vm504 = vcmask 261120
          %v506 = vsel %vm504, %v499, 0
          %v509 = vsel %vm504, %v500, 0
          %v512 = vsel %vm504, %v501, 0
          %v515 = vsel %vm504, %v502, 0
          %v518 = vsel %vm504, %v503, 0
          %520 = vmatprep.subr.mxu0 0.0
          %521 = vmatpush1.xpose.msra.mxu0 %v509
          %522 = vmatprep.subr.mxu0 0.0
          %523 = vmatpush1.xpose.msra.mxu0 %v512
          %524 = vmatprep.subr.mxu0 0.0
          %525 = vmatpush1.xpose.msra.mxu0 %v515
          %526 = vmatprep.subr.mxu0 0.0
          %527 = vmatpush1.xpose.msra.mxu0 %v518
          %528 = vmatprep.subr.mxu0 0.0
          %529 = vmatpush1.xpose.msra.mxu0 0.0
          %530 = vmatprep.subr.mxu0 0.0
          %531 = vmatpush1.xpose.msra.mxu0 0.0
          %532 = vmatprep.subr.mxu0 0.0
          %533 = vmatpush1.xpose.msra.mxu0 0.0
          %534 = vmatprep.subr.mxu0 0.0
          %535 = vmatpush1.xpose.msra.mxu0 0.0
          %536 = vmatprep.subr.mxu0 0.0
          %537 = vmatpush1.xpose.msra.mxu0 0.0
          %538 = vmatprep.subr.mxu0 0.0
          %539 = vmatpush1.xpose.msra.mxu0 0.0
          %540 = vmatprep.subr.mxu0 0.0
          %541 = vmatpush1.xpose.msra.mxu0 0.0
          %542 = vmatprep.subr.mxu0 0.0
          %543 = vmatpush1.xpose.msra.mxu0 0.0
          %544 = vmatprep.subr.mxu0 0.0
          %545 = vmatpush1.xpose.msra.mxu0 0.0
          %546 = vmatprep.subr.mxu0 0.0
          %547 = vmatpush1.xpose.msra.mxu0 0.0
          %548 = vmatprep.subr.mxu0 0.0
          %549 = vmatpush1.xpose.msra.mxu0 0.0
          %550 = vmatprep.subr.mxu0 0.0
          %551 = vmatpush1.xpose.msra.mxu0 0.0
          %552 = vmatprep.subr.mxu0 0.0
          %553 = vmatpush1.xpose.msra.mxu0 0.0
          %554 = vmatprep.subr.mxu0 0.0
          %555 = vmatpush1.xpose.msra.mxu0 0.0
          %556 = vmatprep.subr.mxu0 0.0
          %557 = vmatpush1.xpose.msra.mxu0 0.0
          %558 = vmatprep.subr.mxu0 0.0
          %559 = vmatpush1.xpose.msra.mxu0 0.0
          %560 = vmatprep.subr.mxu0 0.0
          %561 = vmatpush1.xpose.msra.mxu0 0.0
          %562 = vmatprep.subr.mxu0 0.0
          %563 = vmatpush1.xpose.msra.mxu0 0.0
          %564 = vmatprep.subr.mxu0 0.0
          %565 = vmatpush1.xpose.msra.mxu0 0.0
          %566 = vmatprep.subr.mxu0 0.0
          %567 = vmatpush1.xpose.msra.mxu0 0.0
          %568 = vmatprep.subr.mxu0 0.0
          %569 = vmatpush1.xpose.msra.mxu0 0.0
          %570 = vmatprep.subr.mxu0 0.0
          %571 = vmatpush1.xpose.msra.mxu0 0.0
          %572 = vmatprep.subr.mxu0 0.0
          %573 = vmatpush1.xpose.msra.mxu0 0.0
          %574 = vmatprep.subr.mxu0 0.0
          %575 = vmatpush1.xpose.msra.mxu0 0.0
          %576 = vmatprep.subr.mxu0 0.0
          %577 = vmatpush1.xpose.msra.mxu0 0.0
          %578 = vmatprep.subr.mxu0 0.0
          %579 = vmatpush1.xpose.msra.mxu0 0.0
          %580 = vmatprep.subr.mxu0 0.0
          %581 = vmatpush1.xpose.msra.mxu0 0.0
          %582 = vmatprep.subr.mxu0 0.0
          %583 = vmatpush1.xpose.msra.mxu0 0.0
          %584 = vmatprep.mubr.f32.mxu0 0.0
          %585 = vmatmul.mubr.f32.gmra.mrb[0].mxu0 %v506
          %v586 = vpop.f32.mrb[0].mxu0
          %v587 = vadd.f32 0.0, %v586
          %v588 = vpop.f32.mrb[0].mxu0
          %589 = vdwg.mxu0
          %590 = vst.msk [vmem:[#allocation2] sm:$0xff] %vm504, %v587
          %v591 = vld [vmem:[%s422] sm:$0xff]
          %v592 = vld [vmem:[#allocation13] sm:$0xff]
          %v593 = vld [vmem:[#allocation13 + $0x8] sm:$0xff]
          %v594 = vld [vmem:[#allocation13 + $0x10] sm:$0xff]
          %v595 = vld [vmem:[#allocation13 + $0x18] sm:$0xff]
          %v597 = vsel %vm504, %v591, 0
          %v600 = vsel %vm504, %v592, 0
          %v603 = vsel %vm504, %v593, 0
          %v606 = vsel %vm504, %v594, 0
          %v609 = vsel %vm504, %v595, 0
          %611 = vmatprep.subr.mxu0 0.0
          %612 = vmatpush1.xpose.msra.mxu0 %v600
          %613 = vmatprep.subr.mxu0 0.0
          %614 = vmatpush1.xpose.msra.mxu0 %v603
          %615 = vmatprep.subr.mxu0 0.0
          %616 = vmatpush1.xpose.msra.mxu0 %v606
          %617 = vmatprep.subr.mxu0 0.0
          %618 = vmatpush1.xpose.msra.mxu0 %v609
          %619 = vmatprep.subr.mxu0 0.0
          %620 = vmatpush1.xpose.msra.mxu0 0.0
          %621 = vmatprep.subr.mxu0 0.0
          %622 = vmatpush1.xpose.msra.mxu0 0.0
          %623 = vmatprep.subr.mxu0 0.0
          %624 = vmatpush1.xpose.msra.mxu0 0.0
          %625 = vmatprep.subr.mxu0 0.0
          %626 = vmatpush1.xpose.msra.mxu0 0.0
          %627 = vmatprep.subr.mxu0 0.0
          %628 = vmatpush1.xpose.msra.mxu0 0.0
          %629 = vmatprep.subr.mxu0 0.0
          %630 = vmatpush1.xpose.msra.mxu0 0.0
          %631 = vmatprep.subr.mxu0 0.0
          %632 = vmatpush1.xpose.msra.mxu0 0.0
          %633 = vmatprep.subr.mxu0 0.0
          %634 = vmatpush1.xpose.msra.mxu0 0.0
          %635 = vmatprep.subr.mxu0 0.0
          %636 = vmatpush1.xpose.msra.mxu0 0.0
          %637 = vmatprep.subr.mxu0 0.0
          %638 = vmatpush1.xpose.msra.mxu0 0.0
          %639 = vmatprep.subr.mxu0 0.0
          %640 = vmatpush1.xpose.msra.mxu0 0.0
          %641 = vmatprep.subr.mxu0 0.0
          %642 = vmatpush1.xpose.msra.mxu0 0.0
          %643 = vmatprep.subr.mxu0 0.0
          %644 = vmatpush1.xpose.msra.mxu0 0.0
          %645 = vmatprep.subr.mxu0 0.0
          %646 = vmatpush1.xpose.msra.mxu0 0.0
          %647 = vmatprep.subr.mxu0 0.0
          %648 = vmatpush1.xpose.msra.mxu0 0.0
          %649 = vmatprep.subr.mxu0 0.0
          %650 = vmatpush1.xpose.msra.mxu0 0.0
          %651 = vmatprep.subr.mxu0 0.0
          %652 = vmatpush1.xpose.msra.mxu0 0.0
          %653 = vmatprep.subr.mxu0 0.0
          %654 = vmatpush1.xpose.msra.mxu0 0.0
          %655 = vmatprep.subr.mxu0 0.0
          %656 = vmatpush1.xpose.msra.mxu0 0.0
          %657 = vmatprep.subr.mxu0 0.0
          %658 = vmatpush1.xpose.msra.mxu0 0.0
          %659 = vmatprep.subr.mxu0 0.0
          %660 = vmatpush1.xpose.msra.mxu0 0.0
          %661 = vmatprep.subr.mxu0 0.0
          %662 = vmatpush1.xpose.msra.mxu0 0.0
          %663 = vmatprep.subr.mxu0 0.0
          %664 = vmatpush1.xpose.msra.mxu0 0.0
          %665 = vmatprep.subr.mxu0 0.0
          %666 = vmatpush1.xpose.msra.mxu0 0.0
          %667 = vmatprep.subr.mxu0 0.0
          %668 = vmatpush1.xpose.msra.mxu0 0.0
          %669 = vmatprep.subr.mxu0 0.0
          %670 = vmatpush1.xpose.msra.mxu0 0.0
          %671 = vmatprep.subr.mxu0 0.0
          %672 = vmatpush1.xpose.msra.mxu0 0.0
          %673 = vmatprep.subr.mxu0 0.0
          %674 = vmatpush1.xpose.msra.mxu0 0.0
          %675 = vmatprep.mubr.f32.mxu0 0.0
          %676 = vmatmul.mubr.f32.gmra.mrb[0].mxu0 %v597
          %v677 = vpop.f32.mrb[0].mxu0
          %v678 = vadd.f32 0.0, %v677
          %v679 = vpop.f32.mrb[0].mxu0
          %680 = vdwg.mxu0
          %681 = vst.msk [vmem:[#allocation3] sm:$0xff] %vm504, %v678
        $region84: #{tpu_custom_call.1} parent=51 // pred_fallthru
          _
        %v682 = vld [vmem:[%s404] sm:$0xff]
        %v683 = vld [vmem:[#allocation10] sm:$0xff]
        %v684 = vld [vmem:[#allocation10 + $0x8] sm:$0xff]
        %v685 = vld [vmem:[#allocation10 + $0x10] sm:$0xff]
        %v686 = vld [vmem:[#allocation10 + $0x18] sm:$0xff]
        %vm687 = vcmask 261120
        %v689 = vsel %vm687, %v682, 0
        %v692 = vsel %vm687, %v683, 0
        %v695 = vsel %vm687, %v684, 0
        %v698 = vsel %vm687, %v685, 0
        %v701 = vsel %vm687, %v686, 0
        %703 = vmatprep.subr.mxu0 0.0
        %704 = vmatpush1.xpose.msra.mxu0 %v692
        %705 = vmatprep.subr.mxu0 0.0
        %706 = vmatpush1.xpose.msra.mxu0 %v695
        %707 = vmatprep.subr.mxu0 0.0
        %708 = vmatpush1.xpose.msra.mxu0 %v698
        %709 = vmatprep.subr.mxu0 0.0
        %710 = vmatpush1.xpose.msra.mxu0 %v701
        %711 = vmatprep.subr.mxu0 0.0
        %712 = vmatpush1.xpose.msra.mxu0 0.0
        %713 = vmatprep.subr.mxu0 0.0
        %714 = vmatpush1.xpose.msra.mxu0 0.0
        %715 = vmatprep.subr.mxu0 0.0
        %716 = vmatpush1.xpose.msra.mxu0 0.0
        %717 = vmatprep.subr.mxu0 0.0
        %718 = vmatpush1.xpose.msra.mxu0 0.0
        %719 = vmatprep.subr.mxu0 0.0
        %720 = vmatpush1.xpose.msra.mxu0 0.0
        %721 = vmatprep.subr.mxu0 0.0
        %722 = vmatpush1.xpose.msra.mxu0 0.0
        %723 = vmatprep.subr.mxu0 0.0
        %724 = vmatpush1.xpose.msra.mxu0 0.0
        %725 = vmatprep.subr.mxu0 0.0
        %726 = vmatpush1.xpose.msra.mxu0 0.0
        %727 = vmatprep.subr.mxu0 0.0
        %728 = vmatpush1.xpose.msra.mxu0 0.0
        %729 = vmatprep.subr.mxu0 0.0
        %730 = vmatpush1.xpose.msra.mxu0 0.0
        %731 = vmatprep.subr.mxu0 0.0
        %732 = vmatpush1.xpose.msra.mxu0 0.0
        %733 = vmatprep.subr.mxu0 0.0
        %734 = vmatpush1.xpose.msra.mxu0 0.0
        %735 = vmatprep.subr.mxu0 0.0
        %736 = vmatpush1.xpose.msra.mxu0 0.0
        %737 = vmatprep.subr.mxu0 0.0
        %738 = vmatpush1.xpose.msra.mxu0 0.0
        %739 = vmatprep.subr.mxu0 0.0
        %740 = vmatpush1.xpose.msra.mxu0 0.0
        %741 = vmatprep.subr.mxu0 0.0
        %742 = vmatpush1.xpose.msra.mxu0 0.0
        %743 = vmatprep.subr.mxu0 0.0
        %744 = vmatpush1.xpose.msra.mxu0 0.0
        %745 = vmatprep.subr.mxu0 0.0
        %746 = vmatpush1.xpose.msra.mxu0 0.0
        %747 = vmatprep.subr.mxu0 0.0
        %748 = vmatpush1.xpose.msra.mxu0 0.0
        %749 = vmatprep.subr.mxu0 0.0
        %750 = vmatpush1.xpose.msra.mxu0 0.0
        %751 = vmatprep.subr.mxu0 0.0
        %752 = vmatpush1.xpose.msra.mxu0 0.0
        %753 = vmatprep.subr.mxu0 0.0
        %754 = vmatpush1.xpose.msra.mxu0 0.0
        %755 = vmatprep.subr.mxu0 0.0
        %756 = vmatpush1.xpose.msra.mxu0 0.0
        %757 = vmatprep.subr.mxu0 0.0
        %758 = vmatpush1.xpose.msra.mxu0 0.0
        %759 = vmatprep.subr.mxu0 0.0
        %760 = vmatpush1.xpose.msra.mxu0 0.0
        %761 = vmatprep.subr.mxu0 0.0
        %762 = vmatpush1.xpose.msra.mxu0 0.0
        %763 = vmatprep.subr.mxu0 0.0
        %764 = vmatpush1.xpose.msra.mxu0 0.0
        %765 = vmatprep.subr.mxu0 0.0
        %766 = vmatpush1.xpose.msra.mxu0 0.0
        %767 = vmatprep.mubr.f32.mxu0 0.0
        %768 = vmatmul.mubr.f32.gmra.mrb[0].mxu0 %v689
        %v769 = vpop.f32.mrb[0].mxu0
        %v770 = vadd.f32 0.0, %v769
        %v771 = vpop.f32.mrb[0].mxu0
        %772 = vdwg.mxu0
        %v773 = vmul.f32 %v770, 0.25
        %v774 = vld [vmem:[#allocation2] sm:$0xff]
        %v775 = vld [vmem:[#allocation3] sm:$0xff]
        %v776 = vld [vmem:[%s494] sm:$0xf]
        %v777 = vunpack.c.l.bf16 %v776
        %vm778 = vcmask 130048
        %v780 = vsel %vm778, %v773, 0
        %v783 = vsel %vm778, %v774, 0
        %785 = vmatprep.subr.mxu0 0.0
        %786 = vmatpush1.xpose.msra.mxu0 %v783
        %787 = vmatprep.subr.mxu0 0.0
        %788 = vmatpush1.xpose.msra.mxu0 0.0
        %789 = vmatprep.subr.mxu0 0.0
        %790 = vmatpush1.xpose.msra.mxu0 0.0
        %791 = vmatprep.subr.mxu0 0.0
        %792 = vmatpush1.xpose.msra.mxu0 0.0
        %793 = vmatprep.subr.mxu0 0.0
        %794 = vmatpush1.xpose.msra.mxu0 0.0
        %795 = vmatprep.subr.mxu0 0.0
        %796 = vmatpush1.xpose.msra.mxu0 0.0
        %797 = vmatprep.subr.mxu0 0.0
        %798 = vmatpush1.xpose.msra.mxu0 0.0
        %799 = vmatprep.subr.mxu0 0.0
        %800 = vmatpush1.xpose.msra.mxu0 0.0
        %801 = vmatprep.subr.mxu0 0.0
        %802 = vmatpush1.xpose.msra.mxu0 0.0
        %803 = vmatprep.subr.mxu0 0.0
        %804 = vmatpush1.xpose.msra.mxu0 0.0
        %805 = vmatprep.subr.mxu0 0.0
        %806 = vmatpush1.xpose.msra.mxu0 0.0
        %807 = vmatprep.subr.mxu0 0.0
        %808 = vmatpush1.xpose.msra.mxu0 0.0
        %809 = vmatprep.subr.mxu0 0.0
        %810 = vmatpush1.xpose.msra.mxu0 0.0
        %811 = vmatprep.subr.mxu0 0.0
        %812 = vmatpush1.xpose.msra.mxu0 0.0
        %813 = vmatprep.subr.mxu0 0.0
        %814 = vmatpush1.xpose.msra.mxu0 0.0
        %815 = vmatprep.subr.mxu0 0.0
        %816 = vmatpush1.xpose.msra.mxu0 0.0
        %817 = vmatprep.subr.mxu0 0.0
        %818 = vmatpush1.xpose.msra.mxu0 0.0
        %819 = vmatprep.subr.mxu0 0.0
        %820 = vmatpush1.xpose.msra.mxu0 0.0
        %821 = vmatprep.subr.mxu0 0.0
        %822 = vmatpush1.xpose.msra.mxu0 0.0
        %823 = vmatprep.subr.mxu0 0.0
        %824 = vmatpush1.xpose.msra.mxu0 0.0
        %825 = vmatprep.subr.mxu0 0.0
        %826 = vmatpush1.xpose.msra.mxu0 0.0
        %827 = vmatprep.subr.mxu0 0.0
        %828 = vmatpush1.xpose.msra.mxu0 0.0
        %829 = vmatprep.subr.mxu0 0.0
        %830 = vmatpush1.xpose.msra.mxu0 0.0
        %831 = vmatprep.subr.mxu0 0.0
        %832 = vmatpush1.xpose.msra.mxu0 0.0
        %833 = vmatprep.subr.mxu0 0.0
        %834 = vmatpush1.xpose.msra.mxu0 0.0
        %835 = vmatprep.subr.mxu0 0.0
        %836 = vmatpush1.xpose.msra.mxu0 0.0
        %837 = vmatprep.subr.mxu0 0.0
        %838 = vmatpush1.xpose.msra.mxu0 0.0
        %839 = vmatprep.subr.mxu0 0.0
        %840 = vmatpush1.xpose.msra.mxu0 0.0
        %841 = vmatprep.subr.mxu0 0.0
        %842 = vmatpush1.xpose.msra.mxu0 0.0
        %843 = vmatprep.subr.mxu0 0.0
        %844 = vmatpush1.xpose.msra.mxu0 0.0
        %845 = vmatprep.subr.mxu0 0.0
        %846 = vmatpush1.xpose.msra.mxu0 0.0
        %847 = vmatprep.subr.mxu0 0.0
        %848 = vmatpush1.xpose.msra.mxu0 0.0
        %849 = vmatprep.mubr.f32.mxu0 0.0
        %850 = vmatmul.mubr.f32.gmra.mrb[0].mxu0 %v780
        %v851 = vpop.f32.mrb[0].mxu0
        %v852 = vadd.f32 %v777, %v851
        %v853 = vpop.f32.mrb[0].mxu0
        %854 = vdwg.mxu0
        %vm855 = vcmask 64512
        %v856 = vsel %vm855, %v852, -inf
        %857 = vmax.xlane.f32.xlu0 %v856
        %v858 = vpop.xlane.xlu0 %857
        %v859 = vsub.f32 %v852, %v858
        %v860 = vmul.f32 %v859, 1.442695
        %v861 = vpow.pop %v860
        %v862 = vsel %vm855, %v861, 0.0
        %863 = vadd.xlane.f32.xlu0 %v862
        %v864 = vpop.xlane.xlu0 %863
        %v865 = vrcp.pop %v864
        %v866 = vmul.f32 %v861, %v865
        %v868 = vsel %vm855, %v866, 0
        %870 = vmatprep.subr.mxu0 0.0
        %871 = vmatpush1.msra.mxu0 %v775
        %872 = vmatprep.subr.mxu0 0.0
        %873 = vmatpush1.msra.mxu0 0.0
        %874 = vmatprep.subr.mxu0 0.0
        %875 = vmatpush1.msra.mxu0 0.0
        %876 = vmatprep.subr.mxu0 0.0
        %877 = vmatpush1.msra.mxu0 0.0
        %878 = vmatprep.subr.mxu0 0.0
        %879 = vmatpush1.msra.mxu0 0.0
        %880 = vmatprep.subr.mxu0 0.0
        %881 = vmatpush1.msra.mxu0 0.0
        %882 = vmatprep.subr.mxu0 0.0
        %883 = vmatpush1.msra.mxu0 0.0
        %884 = vmatprep.subr.mxu0 0.0
        %885 = vmatpush1.msra.mxu0 0.0
        %886 = vmatprep.subr.mxu0 0.0
        %887 = vmatpush1.msra.mxu0 0.0
        %888 = vmatprep.subr.mxu0 0.0
        %889 = vmatpush1.msra.mxu0 0.0
        %890 = vmatprep.subr.mxu0 0.0
        %891 = vmatpush1.msra.mxu0 0.0
        %892 = vmatprep.subr.mxu0 0.0
        %893 = vmatpush1.msra.mxu0 0.0
        %894 = vmatprep.subr.mxu0 0.0
        %895 = vmatpush1.msra.mxu0 0.0
        %896 = vmatprep.subr.mxu0 0.0
        %897 = vmatpush1.msra.mxu0 0.0
        %898 = vmatprep.subr.mxu0 0.0
        %899 = vmatpush1.msra.mxu0 0.0
        %900 = vmatprep.subr.mxu0 0.0
        %901 = vmatpush1.msra.mxu0 0.0
        %902 = vmatprep.subr.mxu0 0.0
        %903 = vmatpush1.msra.mxu0 0.0
        %904 = vmatprep.subr.mxu0 0.0
        %905 = vmatpush1.msra.mxu0 0.0
        %906 = vmatprep.subr.mxu0 0.0
        %907 = vmatpush1.msra.mxu0 0.0
        %908 = vmatprep.subr.mxu0 0.0
        %909 = vmatpush1.msra.mxu0 0.0
        %910 = vmatprep.subr.mxu0 0.0
        %911 = vmatpush1.msra.mxu0 0.0
        %912 = vmatprep.subr.mxu0 0.0
        %913 = vmatpush1.msra.mxu0 0.0
        %914 = vmatprep.subr.mxu0 0.0
        %915 = vmatpush1.msra.mxu0 0.0
        %916 = vmatprep.subr.mxu0 0.0
        %917 = vmatpush1.msra.mxu0 0.0
        %918 = vmatprep.subr.mxu0 0.0
        %919 = vmatpush1.msra.mxu0 0.0
        %920 = vmatprep.subr.mxu0 0.0
        %921 = vmatpush1.msra.mxu0 0.0
        %922 = vmatprep.subr.mxu0 0.0
        %923 = vmatpush1.msra.mxu0 0.0
        %924 = vmatprep.subr.mxu0 0.0
        %925 = vmatpush1.msra.mxu0 0.0
        %926 = vmatprep.subr.mxu0 0.0
        %927 = vmatpush1.msra.mxu0 0.0
        %928 = vmatprep.subr.mxu0 0.0
        %929 = vmatpush1.msra.mxu0 0.0
        %930 = vmatprep.subr.mxu0 0.0
        %931 = vmatpush1.msra.mxu0 0.0
        %932 = vmatprep.subr.mxu0 0.0
        %933 = vmatpush1.msra.mxu0 0.0
        %934 = vmatprep.mubr.f32.mxu0 0.0
        %935 = vmatmul.mubr.f32.gmra.mrb[0].mxu0 %v868
        %v936 = vpop.f32.mrb[0].mxu0
        %v937 = vadd.f32 0.0, %v936
        %v938 = vpop.f32.mrb[0].mxu0
        %939 = vdwg.mxu0
        %940 = vrot.lane.b32.xlu0 %v773, 112
        %v941 = vpop.permute.xlu0 %940
        %942 = vrot.lane.b32.xlu0 %v774, 112
        %v943 = vpop.permute.xlu0 %942
        %v944 = vsel %vm778, %v941, 0
        %v946 = vsel %vm778, %v943, 0
        %948 = vmatprep.subr.mxu0 0.0
        %949 = vmatpush1.xpose.msra.mxu0 %v946
        %950 = vmatprep.subr.mxu0 0.0
        %951 = vmatpush1.xpose.msra.mxu0 0.0
        %952 = vmatprep.subr.mxu0 0.0
        %953 = vmatpush1.xpose.msra.mxu0 0.0
        %954 = vmatprep.subr.mxu0 0.0
        %955 = vmatpush1.xpose.msra.mxu0 0.0
        %956 = vmatprep.subr.mxu0 0.0
        %957 = vmatpush1.xpose.msra.mxu0 0.0
        %958 = vmatprep.subr.mxu0 0.0
        %959 = vmatpush1.xpose.msra.mxu0 0.0
        %960 = vmatprep.subr.mxu0 0.0
        %961 = vmatpush1.xpose.msra.mxu0 0.0
        %962 = vmatprep.subr.mxu0 0.0
        %963 = vmatpush1.xpose.msra.mxu0 0.0
        %964 = vmatprep.subr.mxu0 0.0
        %965 = vmatpush1.xpose.msra.mxu0 0.0
        %966 = vmatprep.subr.mxu0 0.0
        %967 = vmatpush1.xpose.msra.mxu0 0.0
        %968 = vmatprep.subr.mxu0 0.0
        %969 = vmatpush1.xpose.msra.mxu0 0.0
        %970 = vmatprep.subr.mxu0 0.0
        %971 = vmatpush1.xpose.msra.mxu0 0.0
        %972 = vmatprep.subr.mxu0 0.0
        %973 = vmatpush1.xpose.msra.mxu0 0.0
        %974 = vmatprep.subr.mxu0 0.0
        %975 = vmatpush1.xpose.msra.mxu0 0.0
        %976 = vmatprep.subr.mxu0 0.0
        %977 = vmatpush1.xpose.msra.mxu0 0.0
        %978 = vmatprep.subr.mxu0 0.0
        %979 = vmatpush1.xpose.msra.mxu0 0.0
        %980 = vmatprep.subr.mxu0 0.0
        %981 = vmatpush1.xpose.msra.mxu0 0.0
        %982 = vmatprep.subr.mxu0 0.0
        %983 = vmatpush1.xpose.msra.mxu0 0.0
        %984 = vmatprep.subr.mxu0 0.0
        %985 = vmatpush1.xpose.msra.mxu0 0.0
        %986 = vmatprep.subr.mxu0 0.0
        %987 = vmatpush1.xpose.msra.mxu0 0.0
        %988 = vmatprep.subr.mxu0 0.0
        %989 = vmatpush1.xpose.msra.mxu0 0.0
        %990 = vmatprep.subr.mxu0 0.0
        %991 = vmatpush1.xpose.msra.mxu0 0.0
        %992 = vmatprep.subr.mxu0 0.0
        %993 = vmatpush1.xpose.msra.mxu0 0.0
        %994 = vmatprep.subr.mxu0 0.0
        %995 = vmatpush1.xpose.msra.mxu0 0.0
        %996 = vmatprep.subr.mxu0 0.0
        %997 = vmatpush1.xpose.msra.mxu0 0.0
        %998 = vmatprep.subr.mxu0 0.0
        %999 = vmatpush1.xpose.msra.mxu0 0.0
        %1000 = vmatprep.subr.mxu0 0.0
        %1001 = vmatpush1.xpose.msra.mxu0 0.0
        %1002 = vmatprep.subr.mxu0 0.0
        %1003 = vmatpush1.xpose.msra.mxu0 0.0
        %1004 = vmatprep.subr.mxu0 0.0
        %1005 = vmatpush1.xpose.msra.mxu0 0.0
        %1006 = vmatprep.subr.mxu0 0.0
        %1007 = vmatpush1.xpose.msra.mxu0 0.0
        %1008 = vmatprep.subr.mxu0 0.0
        %1009 = vmatpush1.xpose.msra.mxu0 0.0
        %1010 = vmatprep.subr.mxu0 0.0
        %1011 = vmatpush1.xpose.msra.mxu0 0.0
        %1012 = vmatprep.mubr.f32.mxu0 0.0
        %1013 = vmatmul.mubr.f32.gmra.mrb[0].mxu0 %v944
        %v1014 = vpop.f32.mrb[0].mxu0
        %v1015 = vadd.f32 %v777, %v1014
        %v1016 = vpop.f32.mrb[0].mxu0
        %1017 = vdwg.mxu0
        %v1018 = vsel %vm855, %v1015, -inf
        %1019 = vmax.xlane.f32.xlu0 %v1018
        %v1020 = vpop.xlane.xlu0 %1019
        %v1021 = vsub.f32 %v1015, %v1020
        %v1022 = vmul.f32 %v1021, 1.442695
        %v1023 = vpow.pop %v1022
        %v1024 = vsel %vm855, %v1023, 0.0
        %1025 = vadd.xlane.f32.xlu0 %v1024
        %v1026 = vpop.xlane.xlu0 %1025
        %v1027 = vrcp.pop %v1026
        %v1028 = vmul.f32 %v1023, %v1027
        %1030 = vrot.lane.b32.xlu0 %v775, 112
        %v1031 = vpop.permute.xlu0 %1030
        %v1034 = vsel %vm855, %v1028, 0
        %1036 = vmatprep.subr.mxu0 0.0
        %1037 = vmatpush1.msra.mxu0 %v1031
        %1038 = vmatprep.subr.mxu0 0.0
        %1039 = vmatpush1.msra.mxu0 0.0
        %1040 = vmatprep.subr.mxu0 0.0
        %1041 = vmatpush1.msra.mxu0 0.0
        %1042 = vmatprep.subr.mxu0 0.0
        %1043 = vmatpush1.msra.mxu0 0.0
        %1044 = vmatprep.subr.mxu0 0.0
        %1045 = vmatpush1.msra.mxu0 0.0
        %1046 = vmatprep.subr.mxu0 0.0
        %1047 = vmatpush1.msra.mxu0 0.0
        %1048 = vmatprep.subr.mxu0 0.0
        %1049 = vmatpush1.msra.mxu0 0.0
        %1050 = vmatprep.subr.mxu0 0.0
        %1051 = vmatpush1.msra.mxu0 0.0
        %1052 = vmatprep.subr.mxu0 0.0
        %1053 = vmatpush1.msra.mxu0 0.0
        %1054 = vmatprep.subr.mxu0 0.0
        %1055 = vmatpush1.msra.mxu0 0.0
        %1056 = vmatprep.subr.mxu0 0.0
        %1057 = vmatpush1.msra.mxu0 0.0
        %1058 = vmatprep.subr.mxu0 0.0
        %1059 = vmatpush1.msra.mxu0 0.0
        %1060 = vmatprep.subr.mxu0 0.0
        %1061 = vmatpush1.msra.mxu0 0.0
        %1062 = vmatprep.subr.mxu0 0.0
        %1063 = vmatpush1.msra.mxu0 0.0
        %1064 = vmatprep.subr.mxu0 0.0
        %1065 = vmatpush1.msra.mxu0 0.0
        %1066 = vmatprep.subr.mxu0 0.0
        %1067 = vmatpush1.msra.mxu0 0.0
        %1068 = vmatprep.subr.mxu0 0.0
        %1069 = vmatpush1.msra.mxu0 0.0
        %1070 = vmatprep.subr.mxu0 0.0
        %1071 = vmatpush1.msra.mxu0 0.0
        %1072 = vmatprep.subr.mxu0 0.0
        %1073 = vmatpush1.msra.mxu0 0.0
        %1074 = vmatprep.subr.mxu0 0.0
        %1075 = vmatpush1.msra.mxu0 0.0
        %1076 = vmatprep.subr.mxu0 0.0
        %1077 = vmatpush1.msra.mxu0 0.0
        %1078 = vmatprep.subr.mxu0 0.0
        %1079 = vmatpush1.msra.mxu0 0.0
        %1080 = vmatprep.subr.mxu0 0.0
        %1081 = vmatpush1.msra.mxu0 0.0
        %1082 = vmatprep.subr.mxu0 0.0
        %1083 = vmatpush1.msra.mxu0 0.0
        %1084 = vmatprep.subr.mxu0 0.0
        %1085 = vmatpush1.msra.mxu0 0.0
        %1086 = vmatprep.subr.mxu0 0.0
        %1087 = vmatpush1.msra.mxu0 0.0
        %1088 = vmatprep.subr.mxu0 0.0
        %1089 = vmatpush1.msra.mxu0 0.0
        %1090 = vmatprep.subr.mxu0 0.0
        %1091 = vmatpush1.msra.mxu0 0.0
        %1092 = vmatprep.subr.mxu0 0.0
        %1093 = vmatpush1.msra.mxu0 0.0
        %1094 = vmatprep.subr.mxu0 0.0
        %1095 = vmatpush1.msra.mxu0 0.0
        %1096 = vmatprep.subr.mxu0 0.0
        %1097 = vmatpush1.msra.mxu0 0.0
        %1098 = vmatprep.subr.mxu0 0.0
        %1099 = vmatpush1.msra.mxu0 0.0
        %1100 = vmatprep.mubr.f32.mxu0 0.0
        %1101 = vmatmul.mubr.f32.gmra.mrb[0].mxu0 %v1034
        %v1102 = vpop.f32.mrb[0].mxu0
        %v1103 = vadd.f32 0.0, %v1102
        %v1104 = vpop.f32.mrb[0].mxu0
        %1105 = vdwg.mxu0
        %1107 = vrot.lane.b32.xlu0 %v1103, 16
        %v1108 = vpop.permute.xlu0 %1107
        %v1110 = vsel %vm778, %v937, %v1108
        %v1111 = vld [vmem:[#allocation15] sm:$0xff]
        %v1112 = vld [vmem:[#allocation15 + $0x8] sm:$0xff]
        %v1113 = vld [vmem:[#allocation15 + $0x10] sm:$0xff]
        %v1114 = vld [vmem:[#allocation15 + $0x18] sm:$0xff]
        %v1116 = vsel %vm687, %v1110, 0
        %v1119 = vsel %vm687, %v1111, 0
        %v1122 = vsel %vm687, %v1112, 0
        %v1125 = vsel %vm687, %v1113, 0
        %v1128 = vsel %vm687, %v1114, 0
        %1130 = vmatprep.subr.mxu0 0.0
        %1131 = vmatpush1.xpose.msra.mxu0 %v1119
        %1132 = vmatprep.subr.mxu0 0.0
        %1133 = vmatpush1.xpose.msra.mxu0 %v1122
        %1134 = vmatprep.subr.mxu0 0.0
        %1135 = vmatpush1.xpose.msra.mxu0 %v1125
        %1136 = vmatprep.subr.mxu0 0.0
        %1137 = vmatpush1.xpose.msra.mxu0 %v1128
        %1138 = vmatprep.subr.mxu0 0.0
        %1139 = vmatpush1.xpose.msra.mxu0 0.0
        %1140 = vmatprep.subr.mxu0 0.0
        %1141 = vmatpush1.xpose.msra.mxu0 0.0
        %1142 = vmatprep.subr.mxu0 0.0
        %1143 = vmatpush1.xpose.msra.mxu0 0.0
        %1144 = vmatprep.subr.mxu0 0.0
        %1145 = vmatpush1.xpose.msra.mxu0 0.0
        %1146 = vmatprep.subr.mxu0 0.0
        %1147 = vmatpush1.xpose.msra.mxu0 0.0
        %1148 = vmatprep.subr.mxu0 0.0
        %1149 = vmatpush1.xpose.msra.mxu0 0.0
        %1150 = vmatprep.subr.mxu0 0.0
        %1151 = vmatpush1.xpose.msra.mxu0 0.0
        %1152 = vmatprep.subr.mxu0 0.0
        %1153 = vmatpush1.xpose.msra.mxu0 0.0
        %1154 = vmatprep.subr.mxu0 0.0
        %1155 = vmatpush1.xpose.msra.mxu0 0.0
        %1156 = vmatprep.subr.mxu0 0.0
        %1157 = vmatpush1.xpose.msra.mxu0 0.0
        %1158 = vmatprep.subr.mxu0 0.0
        %1159 = vmatpush1.xpose.msra.mxu0 0.0
        %1160 = vmatprep.subr.mxu0 0.0
        %1161 = vmatpush1.xpose.msra.mxu0 0.0
        %1162 = vmatprep.subr.mxu0 0.0
        %1163 = vmatpush1.xpose.msra.mxu0 0.0
        %1164 = vmatprep.subr.mxu0 0.0
        %1165 = vmatpush1.xpose.msra.mxu0 0.0
        %1166 = vmatprep.subr.mxu0 0.0
        %1167 = vmatpush1.xpose.msra.mxu0 0.0
        %1168 = vmatprep.subr.mxu0 0.0
        %1169 = vmatpush1.xpose.msra.mxu0 0.0
        %1170 = vmatprep.subr.mxu0 0.0
        %1171 = vmatpush1.xpose.msra.mxu0 0.0
        %1172 = vmatprep.subr.mxu0 0.0
        %1173 = vmatpush1.xpose.msra.mxu0 0.0
        %1174 = vmatprep.subr.mxu0 0.0
        %1175 = vmatpush1.xpose.msra.mxu0 0.0
        %1176 = vmatprep.subr.mxu0 0.0
        %1177 = vmatpush1.xpose.msra.mxu0 0.0
        %1178 = vmatprep.subr.mxu0 0.0
        %1179 = vmatpush1.xpose.msra.mxu0 0.0
        %1180 = vmatprep.subr.mxu0 0.0
        %1181 = vmatpush1.xpose.msra.mxu0 0.0
        %1182 = vmatprep.subr.mxu0 0.0
        %1183 = vmatpush1.xpose.msra.mxu0 0.0
        %1184 = vmatprep.subr.mxu0 0.0
        %1185 = vmatpush1.xpose.msra.mxu0 0.0
        %1186 = vmatprep.subr.mxu0 0.0
        %1187 = vmatpush1.xpose.msra.mxu0 0.0
        %1188 = vmatprep.subr.mxu0 0.0
        %1189 = vmatpush1.xpose.msra.mxu0 0.0
        %1190 = vmatprep.subr.mxu0 0.0
        %1191 = vmatpush1.xpose.msra.mxu0 0.0
        %1192 = vmatprep.subr.mxu0 0.0
        %1193 = vmatpush1.xpose.msra.mxu0 0.0
        %1194 = vmatprep.mubr.f32.mxu0 0.0
        %1195 = vmatmul.mubr.f32.gmra.mrb[0].mxu0 %v1116
        %v1196 = vpop.f32.mrb[0].mxu0
        %v1197 = vadd.f32 0.0, %v1196
        %v1198 = vpop.f32.mrb[0].mxu0
        %1199 = vdwg.mxu0
        %1200 = vst.msk [vmem:[%s487] sm:$0xff] %vm687, %v1197
        %s1201 = sand.u32 %s244, 1
        %s1202 = scalar_lea.sflag [#allocation6], %s1201
        %s1203 = sand.u32 %s244, 1
        %s1204 = smul.addr %s1203, 8
        %s1205 = scalar_lea.vmem [#allocation16], %s1204
        // Predicated region
        $region85: #{tpu_custom_call.1} parent=51 // pred_check
          %p1206 = pneg %p254
        $region86: #{tpu_custom_call.1} parent=51 // pred_check_branch
          %1208 = sbr.rel (%p1206) target = $region88
        $region87: #{tpu_custom_call.1} parent=51 // pred_region
          %s1210 = ssub.s32 128, 128
          %1211 = vsyncadd %s1202, %s1210
          %s1212 = sadd.s32 %s35, %s34
          %s1213 = smul.addr %s1212, 128
          %s1214 = scalar_lea.hbm %s8, %s1213
          %s1216 = sshll.u32 %s1205, 4
          %s1217 = int_to_ptr.vmem [resolvable:$true] %s1216
          %1219 = dma.vmem_to_hbm [thread:$0]  %s1217, 128, %s1214, %s1202
        $region88: #{tpu_custom_call.1} parent=51 // pred_fallthru
          _
      $region52: #{tpu_custom_call.1} parent=5 // pred_fallthru
        _
      %p1220 = scmp.le.s32.totalorder 2, %s25
      // Predicated region
      $region89: #{tpu_custom_call.1} parent=5 // pred_check
        %p1221 = pneg %p1220
      $region90: #{tpu_custom_call.1} parent=5 // pred_check_branch
        %1223 = sbr.rel (%p1221) target = $region92
      $region91: #{tpu_custom_call.1} parent=5 // pred_region
        %s1224 = ssub.s32 %s25, 2
        // Predicated region
        $region93: #{tpu_custom_call.1} parent=91 // pred_check
          %p1225 = pneg %p260
        $region94: #{tpu_custom_call.1} parent=91 // pred_check_branch
          %1227 = sbr.rel (%p1225) target = $region96
        $region95: #{tpu_custom_call.1} parent=91 // pred_region
          %s1228 = sand.u32 %s245, 1
          %s1229 = scalar_lea.sflag [#allocation6], %s1228
          %s1230 = sand.u32 %s245, 1
          %s1231 = smul.addr %s1230, 8
          %s1232 = scalar_lea.vmem [#allocation16], %s1231
          %1233 = dma.done %s1229, 128
        $region96: #{tpu_custom_call.1} parent=91 // pred_fallthru
          _
      $region92: #{tpu_custom_call.1} parent=5 // pred_fallthru
        _
    $region6: #{tpu_custom_call.1} parent=1 // loop_footer
      %s29 = sadd.s32 1, %s25
    $region7: #{tpu_custom_call.1} parent=1 // loop_footer_branch
      %24 = sbr.rel target = $region3
    $region8: #{tpu_custom_call.1} parent=1 // loop_exit
      _
    %1234 = vsyncpa [#allocation5], 1
    %s1235 = scalar_lea.sflag [#allocation5], 1
    %1236 = vsyncpa %s1235, 1
    %1237 = vsyncpa [#allocation8], 1
    %s1238 = scalar_lea.sflag [#allocation8], 1
    %1239 = vsyncpa %s1238, 1
    %1240 = vsyncpa [#allocation11], 1
    %1241 = vsyncpa [#allocation14], 1
    %1242 = vsyncpa [#allocation6], 1
    %s1243 = scalar_lea.sflag [#allocation6], 1
    %1244 = vsyncpa %s1243, 1

</llo_original>
